<compile_context>
chip_gen: v7x
topology: tpu7x:2x2x1
jax: 0.10.0
libtpu: 0.0.40
codegen_flags: <defaults>
</compile_context>

<pallas_src>
import functools

import jax
import jax.numpy as jnp
from jax.experimental import pallas as pl
from jax.experimental.pallas import tpu as pltpu


def _round_up(a, b):
    return (a + b - 1) // b * b


def _vmem_capacity_bytes():
    try:
        return int(pltpu.get_tpu_info().vmem_capacity_bytes)
    except Exception:
        pass
    try:
        kind = jax.devices()[0].device_kind.lower()
        if "v7" in kind or "7x" in kind:
            return 64 << 20
    except Exception:
        pass
    return 128 << 20


def _default_use_im2col(mid, kernel_size):
    # im2col (contraction K*mid) only pays on v6e's 256-deep MXU; on v5e a
    # mid>=128 contraction already fills the 128-deep MXU, and on v7x the MRB
    # accumulates in place so K separate dots carry no pop/add penalty.
    if kernel_size <= 1 or mid % 128 != 0:
        return False
    try:
        kind = jax.devices()[0].device_kind.lower()
    except Exception:
        return False
    return "v6" in kind


def _ln_relu(x, gamma, beta, eps=1e-5):
    # LayerNorm over the channel (last) axis, biased variance, f32 stats
    # (matches torch.var_mean(dim=1, unbiased=False) in NCL layout).
    mean = jnp.mean(x, axis=-1, keepdims=True)
    xc = x - mean
    var = jnp.mean(xc * xc, axis=-1, keepdims=True)
    y = xc * jax.lax.rsqrt(var + eps) * gamma + beta
    return jnp.maximum(y, 0.0)


def _resblock_kernel(
    x_ref,
    g1_ref, b1_ref, w1_ref, c1b_ref,
    g2_ref, b2_ref, w2_ref, c2b_ref,
    g3_ref, b3_ref, w3_ref, c3b_ref,
    o_ref,
    ext_ref,
    *, kernel_size, dilation, compute_dtype, use_im2col, multi_tile, h_pad,
):
    K = kernel_size
    H = (K - 1) * dilation                      # causal halo rows

    x = x_ref[0].astype(jnp.float32)            # (TL, C); LN stats in f32
    TL = x.shape[0]
    mid = w1_ref.shape[1]

    # --- LayerNorm1 + ReLU -> 1x1 conv (C -> mid), f32 accumulation ---
    y0 = _ln_relu(x, g1_ref[0], b1_ref[0])
    y1 = jnp.dot(y0.astype(compute_dtype), w1_ref[...],
                 preferred_element_type=jnp.float32) + c1b_ref[0]

    # --- LayerNorm2 + ReLU ---
    y2 = _ln_relu(y1, g2_ref[0], b2_ref[0]).astype(compute_dtype)   # (TL, mid)

    # --- causal dilated conv via persistent halo-extended VMEM scratch ---
    # ext rows [h_pad-H : h_pad) hold the previous tile's last H rows (zeroed
    # at l==0), rows [h_pad : h_pad+TL) hold the current y2 (aligned store).
    # NOTE: correctness requires the L axis to stay the inner, sequentially
    # iterated ("arbitrary") grid axis; the carry is re-zeroed at l==0 per n.
    if H > 0:
        l = pl.program_id(1)

        @pl.when(l == 0)
        def _():
            ext_ref[0:h_pad, :] = jnp.zeros((h_pad, mid), compute_dtype)

        ext_ref[h_pad:h_pad + TL, :] = y2

        def tap(k):
            s = h_pad - H + k * dilation        # tap k looks back (K-1-k)*d
            return ext_ref[s:s + TL, :]
    else:
        def tap(k):
            return y2

    if use_im2col:
        # v6e: merge K taps into one matmul with contraction depth K*mid.
        im2col = jnp.concatenate([tap(k) for k in range(K)], axis=-1)
        acc = jnp.dot(im2col, w2_ref[...],
                      preferred_element_type=jnp.float32) + c2b_ref[0]
    else:
        # v5e / v7x / small-channel path: K slice+dot accumulations.
        acc = jnp.broadcast_to(c2b_ref[0], (TL, mid)).astype(jnp.float32)
        for k in range(K):
            acc = acc + jnp.dot(tap(k), w2_ref[k * mid:(k + 1) * mid, :],
                                preferred_element_type=jnp.float32)

    # carry the last H rows of the extended buffer for the next L tile
    if H > 0 and multi_tile:
        ext_ref[h_pad - H:h_pad, :] = ext_ref[h_pad + TL - H:h_pad + TL, :]

    # --- LayerNorm3 + ReLU -> 1x1 conv (mid -> C), residual, store ---
    y3 = _ln_relu(acc, g3_ref[0], b3_ref[0])
    y4 = jnp.dot(y3.astype(compute_dtype), w3_ref[...],
                 preferred_element_type=jnp.float32) + c3b_ref[0]
    o_ref[0] = (y4 + x).astype(o_ref.dtype)


def res_block_one_masked_nlc(x_nlc, params, *, kernel_size, dilation,
                             compute_dtype=jnp.bfloat16, tl=None,
                             use_im2col=None):
    """Core entry point, NLC layout (N, L, C): no HBM transposes, I/O dtype
    preserved (pass bf16 activations for half the HBM traffic)."""
    N, L, C = x_nlc.shape
    mid = C // 2
    K = kernel_size
    H = (K - 1) * dilation
    h_pad = _round_up(H, 8) if H > 0 else 0

    (g1, b1, w1, c1b, g2, b2, w2, c2b, g3, b3, w3, c3b) = params
    # Weights pre-cast to the MXU operand dtype; LN params / biases stay f32.
    w1c = w1.astype(compute_dtype)                        # (C, mid)
    w2c = w2.reshape(K * mid, mid).astype(compute_dtype)  # (K*mid, mid), k-major
    w3c = w3.astype(compute_dtype)                        # (mid, C)

    if use_im2col is None:
        use_im2col = _default_use_im2col(mid, K)

    vmem_cap = _vmem_capacity_bytes()
    in_itemsize = jnp.dtype(x_nlc.dtype).itemsize

    # --- sequence-tile selection: multiple of 8, >= halo, VMEM-bounded; no
    #     wrapper-side pad/slice passes.  Prefer a tile that divides L exactly
    #     so the boundary tile is never ragged. ---
    lo = _round_up(max(H, 8), 8)
    if tl is None:
        row_cap = 1024 if vmem_cap >= (96 << 20) else 384
        budget_rows = max(8, ((3 << 20) // (max(in_itemsize, 2) * C)) // 8 * 8)
        tl = min(_round_up(L, 8), row_cap, budget_rows)
        tl = _round_up(max(tl, lo), 8)
        if tl < L:
            for cand in range(tl, lo - 1, -8):
                if L % cand == 0:
                    tl = cand
                    break
        # TODO(synk): if H is so large that tl >= round_up(H,8) blows the VMEM
        # budget, fall back to a multi-tile halo (carry spanning >1 tile).
    else:
        tl = _round_up(max(tl, 8), 8)
        if tl < L:
            tl = max(tl, lo)
    if tl >= L:
        tl = L                      # single full-extent tile (no 8-div needed)
        n_ltiles = 1
    else:
        n_ltiles = pl.cdiv(L, tl)   # ragged last tile handled by masked stores

    # --- explicit VMEM budget, capped at 3/4 of physical VMEM ---
    citem = jnp.dtype(compute_dtype).itemsize
    weight_bytes = (C * mid + K * mid * mid + mid * C) * citem + (2 * C + 4 * mid) * 4
    act_bytes = 2 * 2 * tl * C * in_itemsize            # x/out double buffers
    ext_bytes = (h_pad + tl) * mid * citem               # halo scratch
    tmp_bytes = 8 * tl * max(C, K * mid) * 4             # in-kernel f32 temporaries
    vmem_limit = 2 * (weight_bytes + act_bytes + tmp_bytes) + ext_bytes + (2 << 20)
    vmem_limit = int(min(max(vmem_limit, 16 << 20), (vmem_cap * 3) // 4))

    def full(shape):
        return pl.BlockSpec(shape, lambda n, l: (0,) * len(shape))

    # TODO(synk): on v7x with N == 1, add a parallel L-chunk axis for the
    # second TensorCore (recompute the H-row halo from x at each chunk start).
    # TODO(synk): pad C/mid to multiples of 128 (with masked LN stats) when the
    # production channel count is not lane-dense.
    out = pl.pallas_call(
        functools.partial(_resblock_kernel, kernel_size=K, dilation=dilation,
                          compute_dtype=compute_dtype, use_im2col=use_im2col,
                          multi_tile=(n_ltiles > 1), h_pad=h_pad),
        out_shape=jax.ShapeDtypeStruct((N, L, C), x_nlc.dtype),
        grid_spec=pltpu.PrefetchScalarGridSpec(
            num_scalar_prefetch=0,
            grid=(N, n_ltiles),
            in_specs=[
                pl.BlockSpec((1, tl, C), lambda n, l: (n, l, 0)),   # x tile
                full((1, C)), full((1, C)),                          # gamma1, beta1
                full((C, mid)), full((1, mid)),                      # W1, b1
                full((1, mid)), full((1, mid)),                      # gamma2, beta2
                full((K * mid, mid)), full((1, mid)),                # W2 (k-major), b2
                full((1, mid)), full((1, mid)),                      # gamma3, beta3
                full((mid, C)), full((1, C)),                        # W3, b3
            ],
            out_specs=pl.BlockSpec((1, tl, C), lambda n, l: (n, l, 0)),
            scratch_shapes=[
                # halo-extended post-LN2 activation buffer (persists across l)
                pltpu.VMEM((h_pad + tl, mid), compute_dtype),
            ],
        ),
        compiler_params=pltpu.CompilerParams(
            # L axis must stay sequential (halo carry); batch axis feeds
            # megacore on v7x when N >= 2.
            dimension_semantics=("parallel", "arbitrary"),
            vmem_limit_bytes=vmem_limit,
        ),
    )(x_nlc, g1, b1, w1c, c1b, g2, b2, w2c, c2b, g3, b3, w3c, c3b)
    return out


def res_block_one_masked(x_ncl, params, *, kernel_size, dilation,
                         compute_dtype=jnp.bfloat16, tl=None, use_im2col=None):
    """PyTorch-layout wrapper: (N, C, L) in / out, like the nn.Module.

    # TODO(synk): callers that already hold NLC activations should use
    # res_block_one_masked_nlc directly to avoid the two HBM transposes.
    """
    x_nlc = jnp.transpose(x_ncl, (0, 2, 1))
    out_nlc = res_block_one_masked_nlc(x_nlc, params, kernel_size=kernel_size,
                                       dilation=dilation,
                                       compute_dtype=compute_dtype, tl=tl,
                                       use_im2col=use_im2col)
    return jnp.transpose(out_nlc, (0, 2, 1))


def make_params(key, channels, kernel_size):
    """Deterministic synthetic parameters matching the PyTorch module shapes."""
    mid = channels // 2
    ks = jax.random.split(key, 9)
    g1 = 1.0 + 0.1 * jax.random.normal(ks[0], (1, channels), jnp.float32)
    b1 = 0.1 * jax.random.normal(ks[1], (1, channels), jnp.float32)
    g2 = 1.0 + 0.1 * jax.random.normal(ks[2], (1, mid), jnp.float32)
    b2 = 0.1 * jax.random.normal(ks[3], (1, mid), jnp.float32)
    g3 = 1.0 + 0.1 * jax.random.normal(ks[4], (1, mid), jnp.float32)
    b3 = 0.1 * jax.random.normal(ks[5], (1, mid), jnp.float32)
    # Conv weights in matmul form: W1 (C, mid), W2 (K, mid, mid) with
    # W2[k] = w_torch[:, :, k].T, W3 (mid, C).  Biases (1, out).
    w1 = 0.2 * jax.random.normal(ks[6], (channels, mid), jnp.float32)
    c1b = 0.05 * jax.random.normal(ks[6], (1, mid), jnp.float32)
    w2 = 0.2 * jax.random.normal(ks[7], (kernel_size, mid, mid), jnp.float32)
    c2b = 0.05 * jax.random.normal(ks[7], (1, mid), jnp.float32)
    w3 = 0.2 * jax.random.normal(ks[8], (mid, channels), jnp.float32)
    c3b = 0.05 * jax.random.normal(ks[8], (1, channels), jnp.float32)
    return (g1, b1, w1, c1b, g2, b2, w2, c2b, g3, b3, w3, c3b)


def reference_jax(x_ncl, params, *, kernel_size, dilation):
    """Pure-JAX f32 reference (PyTorch semantics) for correctness checking."""
    (g1, b1, w1, c1b, g2, b2, w2, c2b, g3, b3, w3, c3b) = params
    x = jnp.transpose(x_ncl, (0, 2, 1))  # (N, L, C)
    N, L, C = x.shape
    mid = C // 2

    def ln_relu(v, g, b):
        m = jnp.mean(v, axis=-1, keepdims=True)
        va = jnp.mean((v - m) ** 2, axis=-1, keepdims=True)
        return jnp.maximum(((v - m) / jnp.sqrt(va + 1e-5)) * g + b, 0.0)

    y = ln_relu(x, g1, b1)
    y = jnp.einsum("nlc,cm->nlm", y, w1) + c1b
    y = ln_relu(y, g2, b2)
    acc = jnp.broadcast_to(c2b, (N, L, mid))
    for k in range(kernel_size):
        s = (kernel_size - 1 - k) * dilation
        if s == 0:
            xs = y
        else:
            xs = jnp.concatenate(
                [jnp.zeros((N, s, mid), y.dtype), y[:, : L - s, :]], axis=1)
        acc = acc + jnp.einsum("nlm,mo->nlo", xs, w2[k])
    y = ln_relu(acc, g3, b3)
    y = jnp.einsum("nlm,mc->nlc", y, w3) + c3b
    out = y + x
    return jnp.transpose(out, (0, 2, 1))


if __name__ == "__main__":
    kernel_size, dilation = 3, 2
    key = jax.random.PRNGKey(0)
    kx, kp = jax.random.split(key)

    # --- test 1: exact f32 path, multi-tile (tl=8 -> 2 L tiles, halo carry) ---
    N, C, L = 2, 32, 16
    x = jax.random.normal(kx, (N, C, L), jnp.float32)   # PyTorch NCL layout
    params = make_params(kp, C, kernel_size)
    ref = reference_jax(x, params, kernel_size=kernel_size, dilation=dilation)

    out_f32 = res_block_one_masked(x, params, kernel_size=kernel_size,
                                   dilation=dilation,
                                   compute_dtype=jnp.float32, tl=8)
    out_f32 = jax.block_until_ready(out_f32)
    assert out_f32.shape == (N, C, L)
    assert jnp.allclose(out_f32, ref, atol=1e-4, rtol=1e-4), float(
        jnp.max(jnp.abs(out_f32 - ref)))

    # --- test 2: ragged last L tile (L=20, tl=8 -> grid of 3), exercises the
    #     masked boundary handling without any wrapper-side pad/slice ---
    L2 = 20
    x2 = jax.random.normal(jax.random.fold_in(kx, 1), (N, C, L2), jnp.float32)
    ref2 = reference_jax(x2, params, kernel_size=kernel_size, dilation=dilation)
    out2 = res_block_one_masked(x2, params, kernel_size=kernel_size,
                                dilation=dilation,
                                compute_dtype=jnp.float32, tl=8)
    out2 = jax.block_until_ready(out2)
    assert out2.shape == (N, C, L2)
    assert jnp.allclose(out2, ref2, atol=1e-4, rtol=1e-4), float(
        jnp.max(jnp.abs(out2 - ref2)))

    # --- test 3: production path — bf16 I/O + bf16 MXU operands, f32 accum ---
    x_bf16 = x.astype(jnp.bfloat16)
    out_bf16 = res_block_one_masked(x_bf16, params, kernel_size=kernel_size,
                                    dilation=dilation, tl=8)
    out_bf16 = jax.block_until_ready(out_bf16)
    assert out_bf16.shape == (N, C, L)
    assert out_bf16.dtype == jnp.bfloat16
    assert jnp.allclose(out_bf16.astype(jnp.float32), ref,
                        atol=2e-1, rtol=2e-1), float(
        jnp.max(jnp.abs(out_bf16.astype(jnp.float32) - ref)))

    print("KERNEL_OK")
</pallas_src>

<mosaic_0001>
module attributes {stable_mosaic.version = 11 : i64} {
  func.func @_resblock_kernel(%arg0: i32, %arg1: i32, %arg2: memref<1x8x32xf32, #tpu.memory_space<vmem>>, %arg3: memref<1x32xf32, #tpu.memory_space<vmem>>, %arg4: memref<1x32xf32, #tpu.memory_space<vmem>>, %arg5: memref<32x16xf32, #tpu.memory_space<vmem>>, %arg6: memref<1x16xf32, #tpu.memory_space<vmem>>, %arg7: memref<1x16xf32, #tpu.memory_space<vmem>>, %arg8: memref<1x16xf32, #tpu.memory_space<vmem>>, %arg9: memref<48x16xf32, #tpu.memory_space<vmem>>, %arg10: memref<1x16xf32, #tpu.memory_space<vmem>>, %arg11: memref<1x16xf32, #tpu.memory_space<vmem>>, %arg12: memref<1x16xf32, #tpu.memory_space<vmem>>, %arg13: memref<16x32xf32, #tpu.memory_space<vmem>>, %arg14: memref<1x32xf32, #tpu.memory_space<vmem>>, %arg15: memref<1x8x32xf32, #tpu.memory_space<vmem>>, %arg16: memref<16x16xf32, #tpu.memory_space<vmem>>) attributes {dimension_semantics = [#tpu.dimension_semantics<parallel>, #tpu.dimension_semantics<arbitrary>], iteration_bounds = array<i64: 2, 2>, scalar_prefetch = 0 : i64, scratch_operands = 1 : i64, tpu.core_type = #tpu.core_type<tc>, window_params = [{transform_indices = @transform_0, window_bounds = array<i64: 1, 8, 32>}, {pipeline_mode = #tpu.pipeline_mode<synchronous>, transform_indices = @transform_1, window_bounds = array<i64: 1, 32>}, {pipeline_mode = #tpu.pipeline_mode<synchronous>, transform_indices = @transform_2, window_bounds = array<i64: 1, 32>}, {pipeline_mode = #tpu.pipeline_mode<synchronous>, transform_indices = @transform_3, window_bounds = array<i64: 32, 16>}, {pipeline_mode = #tpu.pipeline_mode<synchronous>, transform_indices = @transform_4, window_bounds = array<i64: 1, 16>}, {pipeline_mode = #tpu.pipeline_mode<synchronous>, transform_indices = @transform_5, window_bounds = array<i64: 1, 16>}, {pipeline_mode = #tpu.pipeline_mode<synchronous>, transform_indices = @transform_6, window_bounds = array<i64: 1, 16>}, {pipeline_mode = #tpu.pipeline_mode<synchronous>, transform_indices = @transform_7, window_bounds = array<i64: 48, 16>}, {pipeline_mode = #tpu.pipeline_mode<synchronous>, transform_indices = @transform_8, window_bounds = array<i64: 1, 16>}, {pipeline_mode = #tpu.pipeline_mode<synchronous>, transform_indices = @transform_9, window_bounds = array<i64: 1, 16>}, {pipeline_mode = #tpu.pipeline_mode<synchronous>, transform_indices = @transform_10, window_bounds = array<i64: 1, 16>}, {pipeline_mode = #tpu.pipeline_mode<synchronous>, transform_indices = @transform_11, window_bounds = array<i64: 16, 32>}, {pipeline_mode = #tpu.pipeline_mode<synchronous>, transform_indices = @transform_12, window_bounds = array<i64: 1, 32>}, {transform_indices = @transform_13, window_bounds = array<i64: 1, 8, 32>}]} {
    %c0 = arith.constant 0 : index
    %c0_0 = arith.constant 0 : index
    %c0_1 = arith.constant 0 : index
    %0 = vector.load %arg2[%c0, %c0_0, %c0_1] : memref<1x8x32xf32, #tpu.memory_space<vmem>>, vector<1x8x32xf32>
    %1 = vector.shape_cast %0 : vector<1x8x32xf32> to vector<8x32xf32>
    %c0_2 = arith.constant 0 : index
    %c0_3 = arith.constant 0 : index
    %2 = vector.load %arg3[%c0_2, %c0_3] : memref<1x32xf32, #tpu.memory_space<vmem>>, vector<1x32xf32>
    %3 = vector.shape_cast %2 : vector<1x32xf32> to vector<32xf32>
    %c0_4 = arith.constant 0 : index
    %c0_5 = arith.constant 0 : index
    %4 = vector.load %arg4[%c0_4, %c0_5] : memref<1x32xf32, #tpu.memory_space<vmem>>, vector<1x32xf32>
    %5 = vector.shape_cast %4 : vector<1x32xf32> to vector<32xf32>
    %cst = arith.constant dense<0.000000e+00> : vector<8xf32>
    %6 = vector.multi_reduction <add>, %1, %cst [1] : vector<8x32xf32> to vector<8xf32>
    %7 = vector.shape_cast %6 : vector<8xf32> to vector<8x1xf32>
    %cst_6 = arith.constant 3.200000e+01 : f32
    %8 = vector.broadcast %cst_6 : f32 to vector<8x1xf32>
    %9 = arith.divf %7, %8 : vector<8x1xf32>
    %10 = vector.broadcast %9 : vector<8x1xf32> to vector<8x32xf32>
    %11 = arith.subf %1, %10 : vector<8x32xf32>
    %12 = arith.mulf %11, %11 : vector<8x32xf32>
    %cst_7 = arith.constant dense<0.000000e+00> : vector<8xf32>
    %13 = vector.multi_reduction <add>, %12, %cst_7 [1] : vector<8x32xf32> to vector<8xf32>
    %14 = vector.shape_cast %13 : vector<8xf32> to vector<8x1xf32>
    %cst_8 = arith.constant 3.200000e+01 : f32
    %15 = vector.broadcast %cst_8 : f32 to vector<8x1xf32>
    %16 = arith.divf %14, %15 : vector<8x1xf32>
    %cst_9 = arith.constant 9.99999974E-6 : f32
    %17 = vector.broadcast %cst_9 : f32 to vector<8x1xf32>
    %18 = arith.addf %16, %17 : vector<8x1xf32>
    %19 = math.rsqrt %18 : vector<8x1xf32>
    %20 = vector.broadcast %19 : vector<8x1xf32> to vector<8x32xf32>
    %21 = arith.mulf %11, %20 : vector<8x32xf32>
    %22 = vector.shape_cast %3 : vector<32xf32> to vector<1x32xf32>
    %23 = vector.broadcast %22 : vector<1x32xf32> to vector<8x32xf32>
    %24 = arith.mulf %21, %23 : vector<8x32xf32>
    %25 = vector.shape_cast %5 : vector<32xf32> to vector<1x32xf32>
    %26 = vector.broadcast %25 : vector<1x32xf32> to vector<8x32xf32>
    %27 = arith.addf %24, %26 : vector<8x32xf32>
    %cst_10 = arith.constant 0.000000e+00 : f32
    %28 = vector.broadcast %cst_10 : f32 to vector<8x32xf32>
    %29 = arith.maximumf %27, %28 : vector<8x32xf32>
    %c0_11 = arith.constant 0 : index
    %c0_12 = arith.constant 0 : index
    %30 = vector.load %arg5[%c0_11, %c0_12] : memref<32x16xf32, #tpu.memory_space<vmem>>, vector<32x16xf32>
    %cst_13 = arith.constant dense<0.000000e+00> : vector<8x16xf32>
    %31 = tpu.matmul %29, %30, %cst_13 {dimension_numbers = #tpu.dot_dimension_numbers<[1], [0], [0], [1], [0, 0, 1, 1], [], []>} : vector<8x32xf32>, vector<32x16xf32>, vector<8x16xf32> -> vector<8x16xf32>
    %c0_14 = arith.constant 0 : index
    %c0_15 = arith.constant 0 : index
    %32 = vector.load %arg6[%c0_14, %c0_15] : memref<1x16xf32, #tpu.memory_space<vmem>>, vector<1x16xf32>
    %33 = vector.shape_cast %32 : vector<1x16xf32> to vector<16xf32>
    %34 = vector.shape_cast %33 : vector<16xf32> to vector<1x16xf32>
    %35 = vector.broadcast %34 : vector<1x16xf32> to vector<8x16xf32>
    %36 = arith.addf %31, %35 : vector<8x16xf32>
    %c0_16 = arith.constant 0 : index
    %c0_17 = arith.constant 0 : index
    %37 = vector.load %arg7[%c0_16, %c0_17] : memref<1x16xf32, #tpu.memory_space<vmem>>, vector<1x16xf32>
    %38 = vector.shape_cast %37 : vector<1x16xf32> to vector<16xf32>
    %c0_18 = arith.constant 0 : index
    %c0_19 = arith.constant 0 : index
    %39 = vector.load %arg8[%c0_18, %c0_19] : memref<1x16xf32, #tpu.memory_space<vmem>>, vector<1x16xf32>
    %40 = vector.shape_cast %39 : vector<1x16xf32> to vector<16xf32>
    %cst_20 = arith.constant dense<0.000000e+00> : vector<8xf32>
    %41 = vector.multi_reduction <add>, %36, %cst_20 [1] : vector<8x16xf32> to vector<8xf32>
    %42 = vector.shape_cast %41 : vector<8xf32> to vector<8x1xf32>
    %cst_21 = arith.constant 1.600000e+01 : f32
    %43 = vector.broadcast %cst_21 : f32 to vector<8x1xf32>
    %44 = arith.divf %42, %43 : vector<8x1xf32>
    %45 = vector.broadcast %44 : vector<8x1xf32> to vector<8x16xf32>
    %46 = arith.subf %36, %45 : vector<8x16xf32>
    %47 = arith.mulf %46, %46 : vector<8x16xf32>
    %cst_22 = arith.constant dense<0.000000e+00> : vector<8xf32>
    %48 = vector.multi_reduction <add>, %47, %cst_22 [1] : vector<8x16xf32> to vector<8xf32>
    %49 = vector.shape_cast %48 : vector<8xf32> to vector<8x1xf32>
    %cst_23 = arith.constant 1.600000e+01 : f32
    %50 = vector.broadcast %cst_23 : f32 to vector<8x1xf32>
    %51 = arith.divf %49, %50 : vector<8x1xf32>
    %cst_24 = arith.constant 9.99999974E-6 : f32
    %52 = vector.broadcast %cst_24 : f32 to vector<8x1xf32>
    %53 = arith.addf %51, %52 : vector<8x1xf32>
    %54 = math.rsqrt %53 : vector<8x1xf32>
    %55 = vector.broadcast %54 : vector<8x1xf32> to vector<8x16xf32>
    %56 = arith.mulf %46, %55 : vector<8x16xf32>
    %57 = vector.shape_cast %38 : vector<16xf32> to vector<1x16xf32>
    %58 = vector.broadcast %57 : vector<1x16xf32> to vector<8x16xf32>
    %59 = arith.mulf %56, %58 : vector<8x16xf32>
    %60 = vector.shape_cast %40 : vector<16xf32> to vector<1x16xf32>
    %61 = vector.broadcast %60 : vector<1x16xf32> to vector<8x16xf32>
    %62 = arith.addf %59, %61 : vector<8x16xf32>
    %cst_25 = arith.constant 0.000000e+00 : f32
    %63 = vector.broadcast %cst_25 : f32 to vector<8x16xf32>
    %64 = arith.maximumf %62, %63 : vector<8x16xf32>
    %c0_i32 = arith.constant 0 : i32
    %65 = arith.cmpi eq, %arg1, %c0_i32 : i32
    %66 = arith.extui %65 : i1 to i32
    %c0_i32_26 = arith.constant 0 : i32
    %67 = arith.cmpi ne, %66, %c0_i32_26 : i32
    scf.if %67 {
      %cst_62 = arith.constant 0.000000e+00 : f32
      %126 = vector.broadcast %cst_62 : f32 to vector<8x16xf32>
      %c0_63 = arith.constant 0 : index
      %c0_64 = arith.constant 0 : index
      %127 = vector.load %arg16[%c0_63, %c0_64] : memref<16x16xf32, #tpu.memory_space<vmem>>, vector<8x16xf32>
      tpu.vector_store %arg16[%c0_63, %c0_64], %126 {strides = array<i32>} : memref<16x16xf32, #tpu.memory_space<vmem>>, vector<8x16xf32>,
    } else {
    }
    %c8 = arith.constant 8 : index
    %c0_27 = arith.constant 0 : index
    %68 = vector.load %arg16[%c8, %c0_27] : memref<16x16xf32, #tpu.memory_space<vmem>>, vector<8x16xf32>
    tpu.vector_store %arg16[%c8, %c0_27], %64 {strides = array<i32>} : memref<16x16xf32, #tpu.memory_space<vmem>>, vector<8x16xf32>,
    %c0_28 = arith.constant 0 : index
    %c0_29 = arith.constant 0 : index
    %69 = vector.load %arg10[%c0_28, %c0_29] : memref<1x16xf32, #tpu.memory_space<vmem>>, vector<1x16xf32>
    %70 = vector.shape_cast %69 : vector<1x16xf32> to vector<16xf32>
    %71 = vector.shape_cast %70 : vector<16xf32> to vector<1x16xf32>
    %72 = vector.broadcast %71 : vector<1x16xf32> to vector<8x16xf32>
    %c4 = arith.constant 4 : index
    %c0_30 = arith.constant 0 : index
    %73 = vector.load %arg16[%c4, %c0_30] : memref<16x16xf32, #tpu.memory_space<vmem>>, vector<8x16xf32>
    %c0_31 = arith.constant 0 : index
    %c0_32 = arith.constant 0 : index
    %74 = vector.load %arg9[%c0_31, %c0_32] : memref<48x16xf32, #tpu.memory_space<vmem>>, vector<16x16xf32>
    %cst_33 = arith.constant dense<0.000000e+00> : vector<8x16xf32>
    %75 = tpu.matmul %73, %74, %cst_33 {dimension_numbers = #tpu.dot_dimension_numbers<[1], [0], [0], [1], [0, 0, 1, 1], [], []>} : vector<8x16xf32>, vector<16x16xf32>, vector<8x16xf32> -> vector<8x16xf32>
    %76 = arith.addf %72, %75 : vector<8x16xf32>
    %c6 = arith.constant 6 : index
    %c0_34 = arith.constant 0 : index
    %77 = vector.load %arg16[%c6, %c0_34] : memref<16x16xf32, #tpu.memory_space<vmem>>, vector<8x16xf32>
    %c16 = arith.constant 16 : index
    %c0_35 = arith.constant 0 : index
    %78 = vector.load %arg9[%c16, %c0_35] : memref<48x16xf32, #tpu.memory_space<vmem>>, vector<16x16xf32>
    %cst_36 = arith.constant dense<0.000000e+00> : vector<8x16xf32>
    %79 = tpu.matmul %77, %78, %cst_36 {dimension_numbers = #tpu.dot_dimension_numbers<[1], [0], [0], [1], [0, 0, 1, 1], [], []>} : vector<8x16xf32>, vector<16x16xf32>, vector<8x16xf32> -> vector<8x16xf32>
    %80 = arith.addf %76, %79 : vector<8x16xf32>
    %c8_37 = arith.constant 8 : index
    %c0_38 = arith.constant 0 : index
    %81 = vector.load %arg16[%c8_37, %c0_38] : memref<16x16xf32, #tpu.memory_space<vmem>>, vector<8x16xf32>
    %c32 = arith.constant 32 : index
    %c0_39 = arith.constant 0 : index
    %82 = vector.load %arg9[%c32, %c0_39] : memref<48x16xf32, #tpu.memory_space<vmem>>, vector<16x16xf32>
    %cst_40 = arith.constant dense<0.000000e+00> : vector<8x16xf32>
    %83 = tpu.matmul %81, %82, %cst_40 {dimension_numbers = #tpu.dot_dimension_numbers<[1], [0], [0], [1], [0, 0, 1, 1], [], []>} : vector<8x16xf32>, vector<16x16xf32>, vector<8x16xf32> -> vector<8x16xf32>
    %84 = arith.addf %80, %83 : vector<8x16xf32>
    %c12 = arith.constant 12 : index
    %c0_41 = arith.constant 0 : index
    %85 = vector.load %arg16[%c12, %c0_41] : memref<16x16xf32, #tpu.memory_space<vmem>>, vector<4x16xf32>
    %c4_42 = arith.constant 4 : index
    %c0_43 = arith.constant 0 : index
    %86 = vector.load %arg16[%c4_42, %c0_43] : memref<16x16xf32, #tpu.memory_space<vmem>>, vector<4x16xf32>
    tpu.vector_store %arg16[%c4_42, %c0_43], %85 {strides = array<i32>} : memref<16x16xf32, #tpu.memory_space<vmem>>, vector<4x16xf32>,
    %c0_44 = arith.constant 0 : index
    %c0_45 = arith.constant 0 : index
    %87 = vector.load %arg11[%c0_44, %c0_45] : memref<1x16xf32, #tpu.memory_space<vmem>>, vector<1x16xf32>
    %88 = vector.shape_cast %87 : vector<1x16xf32> to vector<16xf32>
    %c0_46 = arith.constant 0 : index
    %c0_47 = arith.constant 0 : index
    %89 = vector.load %arg12[%c0_46, %c0_47] : memref<1x16xf32, #tpu.memory_space<vmem>>, vector<1x16xf32>
    %90 = vector.shape_cast %89 : vector<1x16xf32> to vector<16xf32>
    %cst_48 = arith.constant dense<0.000000e+00> : vector<8xf32>
    %91 = vector.multi_reduction <add>, %84, %cst_48 [1] : vector<8x16xf32> to vector<8xf32>
    %92 = vector.shape_cast %91 : vector<8xf32> to vector<8x1xf32>
    %cst_49 = arith.constant 1.600000e+01 : f32
    %93 = vector.broadcast %cst_49 : f32 to vector<8x1xf32>
    %94 = arith.divf %92, %93 : vector<8x1xf32>
    %95 = vector.broadcast %94 : vector<8x1xf32> to vector<8x16xf32>
    %96 = arith.subf %84, %95 : vector<8x16xf32>
    %97 = arith.mulf %96, %96 : vector<8x16xf32>
    %cst_50 = arith.constant dense<0.000000e+00> : vector<8xf32>
    %98 = vector.multi_reduction <add>, %97, %cst_50 [1] : vector<8x16xf32> to vector<8xf32>
    %99 = vector.shape_cast %98 : vector<8xf32> to vector<8x1xf32>
    %cst_51 = arith.constant 1.600000e+01 : f32
    %100 = vector.broadcast %cst_51 : f32 to vector<8x1xf32>
    %101 = arith.divf %99, %100 : vector<8x1xf32>
    %cst_52 = arith.constant 9.99999974E-6 : f32
    %102 = vector.broadcast %cst_52 : f32 to vector<8x1xf32>
    %103 = arith.addf %101, %102 : vector<8x1xf32>
    %104 = math.rsqrt %103 : vector<8x1xf32>
    %105 = vector.broadcast %104 : vector<8x1xf32> to vector<8x16xf32>
    %106 = arith.mulf %96, %105 : vector<8x16xf32>
    %107 = vector.shape_cast %88 : vector<16xf32> to vector<1x16xf32>
    %108 = vector.broadcast %107 : vector<1x16xf32> to vector<8x16xf32>
    %109 = arith.mulf %106, %108 : vector<8x16xf32>
    %110 = vector.shape_cast %90 : vector<16xf32> to vector<1x16xf32>
    %111 = vector.broadcast %110 : vector<1x16xf32> to vector<8x16xf32>
    %112 = arith.addf %109, %111 : vector<8x16xf32>
    %cst_53 = arith.constant 0.000000e+00 : f32
    %113 = vector.broadcast %cst_53 : f32 to vector<8x16xf32>
    %114 = arith.maximumf %112, %113 : vector<8x16xf32>
    %c0_54 = arith.constant 0 : index
    %c0_55 = arith.constant 0 : index
    %115 = vector.load %arg13[%c0_54, %c0_55] : memref<16x32xf32, #tpu.memory_space<vmem>>, vector<16x32xf32>
    %cst_56 = arith.constant dense<0.000000e+00> : vector<8x32xf32>
    %116 = tpu.matmul %114, %115, %cst_56 {dimension_numbers = #tpu.dot_dimension_numbers<[1], [0], [0], [1], [0, 0, 1, 1], [], []>} : vector<8x16xf32>, vector<16x32xf32>, vector<8x32xf32> -> vector<8x32xf32>
    %c0_57 = arith.constant 0 : index
    %c0_58 = arith.constant 0 : index
    %117 = vector.load %arg14[%c0_57, %c0_58] : memref<1x32xf32, #tpu.memory_space<vmem>>, vector<1x32xf32>
    %118 = vector.shape_cast %117 : vector<1x32xf32> to vector<32xf32>
    %119 = vector.shape_cast %118 : vector<32xf32> to vector<1x32xf32>
    %120 = vector.broadcast %119 : vector<1x32xf32> to vector<8x32xf32>
    %121 = arith.addf %116, %120 : vector<8x32xf32>
    %122 = arith.addf %121, %1 : vector<8x32xf32>
    %c0_59 = arith.constant 0 : index
    %c0_60 = arith.constant 0 : index
    %c0_61 = arith.constant 0 : index
    %123 = vector.load %arg15[%c0_59, %c0_60, %c0_61] : memref<1x8x32xf32, #tpu.memory_space<vmem>>, vector<1x8x32xf32>
    %124 = vector.shape_cast %123 : vector<1x8x32xf32> to vector<8x32xf32>
    %125 = vector.shape_cast %122 : vector<8x32xf32> to vector<1x8x32xf32>
    tpu.vector_store %arg15[%c0_59, %c0_60, %c0_61], %125 {strides = array<i32>} : memref<1x8x32xf32, #tpu.memory_space<vmem>>, vector<1x8x32xf32>,
    return
  }
  func.func @transform_0(%arg0: i32, %arg1: i32) -> (i32, i32, i32) {
    %c0_i32 = arith.constant 0 : i32
    %c0_i32_0 = arith.constant 0 : i32
    return %arg0, %arg1, %c0_i32 : i32, i32, i32
  }
  func.func @transform_1(%arg0: i32, %arg1: i32) -> (i32, i32) {
    %c0_i32 = arith.constant 0 : i32
    %c0_i32_0 = arith.constant 0 : i32
    %c0_i32_1 = arith.constant 0 : i32
    return %c0_i32, %c0_i32_0 : i32, i32
  }
  func.func @transform_2(%arg0: i32, %arg1: i32) -> (i32, i32) {
    %c0_i32 = arith.constant 0 : i32
    %c0_i32_0 = arith.constant 0 : i32
    %c0_i32_1 = arith.constant 0 : i32
    return %c0_i32, %c0_i32_0 : i32, i32
  }
  func.func @transform_3(%arg0: i32, %arg1: i32) -> (i32, i32) {
    %c0_i32 = arith.constant 0 : i32
    %c0_i32_0 = arith.constant 0 : i32
    %c0_i32_1 = arith.constant 0 : i32
    return %c0_i32, %c0_i32_0 : i32, i32
  }
  func.func @transform_4(%arg0: i32, %arg1: i32) -> (i32, i32) {
    %c0_i32 = arith.constant 0 : i32
    %c0_i32_0 = arith.constant 0 : i32
    %c0_i32_1 = arith.constant 0 : i32
    return %c0_i32, %c0_i32_0 : i32, i32
  }
  func.func @transform_5(%arg0: i32, %arg1: i32) -> (i32, i32) {
    %c0_i32 = arith.constant 0 : i32
    %c0_i32_0 = arith.constant 0 : i32
    %c0_i32_1 = arith.constant 0 : i32
    return %c0_i32, %c0_i32_0 : i32, i32
  }
  func.func @transform_6(%arg0: i32, %arg1: i32) -> (i32, i32) {
    %c0_i32 = arith.constant 0 : i32
    %c0_i32_0 = arith.constant 0 : i32
    %c0_i32_1 = arith.constant 0 : i32
    return %c0_i32, %c0_i32_0 : i32, i32
  }
  func.func @transform_7(%arg0: i32, %arg1: i32) -> (i32, i32) {
    %c0_i32 = arith.constant 0 : i32
    %c0_i32_0 = arith.constant 0 : i32
    %c0_i32_1 = arith.constant 0 : i32
    return %c0_i32, %c0_i32_0 : i32, i32
  }
  func.func @transform_8(%arg0: i32, %arg1: i32) -> (i32, i32) {
    %c0_i32 = arith.constant 0 : i32
    %c0_i32_0 = arith.constant 0 : i32
    %c0_i32_1 = arith.constant 0 : i32
    return %c0_i32, %c0_i32_0 : i32, i32
  }
  func.func @transform_9(%arg0: i32, %arg1: i32) -> (i32, i32) {
    %c0_i32 = arith.constant 0 : i32
    %c0_i32_0 = arith.constant 0 : i32
    %c0_i32_1 = arith.constant 0 : i32
    return %c0_i32, %c0_i32_0 : i32, i32
  }
  func.func @transform_10(%arg0: i32, %arg1: i32) -> (i32, i32) {
    %c0_i32 = arith.constant 0 : i32
    %c0_i32_0 = arith.constant 0 : i32
    %c0_i32_1 = arith.constant 0 : i32
    return %c0_i32, %c0_i32_0 : i32, i32
  }
  func.func @transform_11(%arg0: i32, %arg1: i32) -> (i32, i32) {
    %c0_i32 = arith.constant 0 : i32
    %c0_i32_0 = arith.constant 0 : i32
    %c0_i32_1 = arith.constant 0 : i32
    return %c0_i32, %c0_i32_0 : i32, i32
  }
  func.func @transform_12(%arg0: i32, %arg1: i32) -> (i32, i32) {
    %c0_i32 = arith.constant 0 : i32
    %c0_i32_0 = arith.constant 0 : i32
    %c0_i32_1 = arith.constant 0 : i32
    return %c0_i32, %c0_i32_0 : i32, i32
  }
  func.func @transform_13(%arg0: i32, %arg1: i32) -> (i32, i32, i32) {
    %c0_i32 = arith.constant 0 : i32
    %c0_i32_0 = arith.constant 0 : i32
    return %arg0, %arg1, %c0_i32 : i32, i32, i32
  }
}

</mosaic_0001>

<llo_original>
// kernel: tpu_custom_call.1
$region0: #{tpu_custom_call.1}
  #allocation0 [shape = 'u32[]', space=smem, size = 0x4, offset = 0x4, fixed_abs, tag = 'smem constant byte address 0x4 - core index']
  #allocation1 [shape = 'u32[144,128]{1,0:T(1,128)}', space=vmem, size = 0x12000, scoped, tag = 'internal scratch']
  #allocation2 [shape = 'f32[16,16]{1,0:T(8,128)}', space=vmem, size = 0x2000, scoped, tag = 'scratch operand']
  %s0 = inlined_call_operand.vmem [shape: f32[2,16,32], index: 0, kind: input, shape index: {}]
  %s1 = inlined_call_operand.vmem [shape: f32[1,32], index: 1, kind: input, shape index: {}]
  %s2 = inlined_call_operand.vmem [shape: f32[1,32], index: 2, kind: input, shape index: {}]
  %s3 = inlined_call_operand.vmem [shape: f32[32,16], index: 3, kind: input, shape index: {}]
  %s4 = inlined_call_operand.vmem [shape: f32[1,16], index: 4, kind: input, shape index: {}]
  %s5 = inlined_call_operand.vmem [shape: f32[1,16], index: 5, kind: input, shape index: {}]
  %s6 = inlined_call_operand.vmem [shape: f32[1,16], index: 6, kind: input, shape index: {}]
  %s7 = inlined_call_operand.vmem [shape: f32[48,16], index: 7, kind: input, shape index: {}]
  %s8 = inlined_call_operand.vmem [shape: f32[1,16], index: 8, kind: input, shape index: {}]
  %s9 = inlined_call_operand.vmem [shape: f32[1,16], index: 9, kind: input, shape index: {}]
  %s10 = inlined_call_operand.vmem [shape: f32[1,16], index: 10, kind: input, shape index: {}]
  %s11 = inlined_call_operand.vmem [shape: f32[16,32], index: 11, kind: input, shape index: {}]
  %s12 = inlined_call_operand.vmem [shape: f32[1,32], index: 12, kind: input, shape index: {}]
  %s13 = inlined_call_operand.hbm [shape: f32[2,16,32], index: 13, kind: output, shape index: {}]
  %s14 = sld [smem:[#allocation0]]
  $region89: #{tpu_custom_call.1} parent=0
    _
  %s16 = ssub.s32 1, %s14
  %s17 = scalar_select 0, %s16, %s14
  $region1: #{tpu_custom_call.1} parent=0
    #allocation3 [shape = 'u8[8192]{0}', space=vmem, size = 0x2000, scoped, tag = 'output window, operand 0']
    #allocation4 [shape = 's32[2]{0}', space=sflag, size = 0x8, scoped, tag = 'scoped memory for tpu_custom_call.1']
    %18 = vsyncpa [#allocation4], 0
    %s19 = scalar_lea.sflag [#allocation4], 1
    %20 = vsyncpa %s19, 0
    loop: start=0, step=1, limit=6
    $region2: #{tpu_custom_call.1} parent=1 // loop_pre_header
      _
    $region3: #{tpu_custom_call.1} parent=1 // loop_header
      %s22 = sphi 0, %s26
      %p23 = scmp.ge.s32.totalorder %s22, 6
      %s29 = sphi 0, %s41
      %s30 = sphi 0, %s37
      %s31 = sphi 0, %s29
      %s32 = sphi 0, %s30
      %s33 = sphi 0, %s31
      %s34 = sphi 0, %s32
      %s46 = sphi 0, %s48
      %s49 = sphi 0, %s46
      %s50 = sphi 0, %s49
      %s66 = sphi 0, %s50
      %s70 = sphi 0, %s70
      %s72 = sphi 0, %s70
      %s73 = sphi 0, %s72
      %s87 = sphi 0, %s73
      %s91 = sphi 0, %s91
      %s93 = sphi 0, %s91
      %s94 = sphi 0, %s93
      %s108 = sphi 0, %s94
      %s112 = sphi 0, %s112
      %s114 = sphi 0, %s112
      %s115 = sphi 0, %s114
      %s129 = sphi 0, %s115
      %s133 = sphi 0, %s133
      %s135 = sphi 0, %s133
      %s136 = sphi 0, %s135
      %s150 = sphi 0, %s136
      %s154 = sphi 0, %s154
      %s156 = sphi 0, %s154
      %s157 = sphi 0, %s156
      %s171 = sphi 0, %s157
      %s175 = sphi 0, %s175
      %s177 = sphi 0, %s175
      %s178 = sphi 0, %s177
      %s192 = sphi 0, %s178
      %s196 = sphi 0, %s196
      %s198 = sphi 0, %s196
      %s199 = sphi 0, %s198
      %s213 = sphi 0, %s199
      %s217 = sphi 0, %s217
      %s219 = sphi 0, %s217
      %s220 = sphi 0, %s219
      %s234 = sphi 0, %s220
      %s238 = sphi 0, %s238
      %s240 = sphi 0, %s238
      %s241 = sphi 0, %s240
      %s255 = sphi 0, %s241
      %s259 = sphi 0, %s259
      %s261 = sphi 0, %s259
      %s262 = sphi 0, %s261
      %s276 = sphi 0, %s262
      %s280 = sphi 0, %s280
      %s282 = sphi 0, %s280
      %s283 = sphi 0, %s282
      %s297 = sphi 0, %s283
      %s301 = sphi 0, %s301
      %s303 = sphi 0, %s301
      %s304 = sphi 0, %s303
      %s318 = sphi 0, %s304
      %s326 = sphi 0, %s328
      %s329 = sphi 0, %s326
      %s330 = sphi 0, %s329
      %s346 = sphi 0, %s330
    $region4: #{tpu_custom_call.1} parent=1 // loop_header_branch
      %25 = sbr.rel (%p23) target = $region8
    $region5: #{tpu_custom_call.1} parent=1 // loop_body
      %s27 = ssub.s32 %s22, 1
      %s28 = ssub.s32 %s22, 2
      %s35 = sadd.s32 1, %s30
      %p36 = scmp.ge.s32.totalorder %s35, 2
      %s37 = scalar_select %p36, 0, %s35
      %s38 = sadd.s32 1, %s29
      %s39 = scalar_select %p36, %s38, %s29
      %p40 = scmp.ge.s32.totalorder %s39, 2
      %s41 = scalar_select %p40, 0, %s39
      %s42 = ssub.s32 %s29, %s41
      %s43 = ssub.s32 %s30, %s37
      %s44 = sor.u32 %s42, %s43
      %p45 = scmp.eq.s32.totalorder %s44, 0
      %s47 = sadd.s32 %s46, 1
      %s48 = scalar_select %p45, %s46, %s47
      %p51 = pneg %p45
      %p52 = scmp.eq.s32.totalorder %s22, 3
      %p53 = por %p51, %p52
      %p54 = scmp.ne.s32.totalorder %s46, %s49
      %p55 = scmp.eq.s32.totalorder %s22, 0
      %p56 = por %p54, %p55
      %p57 = scmp.ne.s32.totalorder %s46, %s49
      %p58 = scmp.eq.s32.totalorder %s27, 3
      %p59 = por %p57, %p58
      %p60 = scmp.ne.s32.totalorder %s49, %s50
      %p61 = scmp.eq.s32.totalorder %s27, 0
      %p62 = por %p60, %p61
      %p63 = scmp.ne.s32.totalorder %s49, %s50
      %p64 = scmp.eq.s32.totalorder %s28, 3
      %p65 = por %p63, %p64
      %p67 = scmp.ne.s32.totalorder %s50, %s66
      %p68 = scmp.eq.s32.totalorder %s28, 0
      %p69 = por %p67, %p68
      %s71 = sadd.s32 %s70, 1
      %p74 = scmp.eq.s32.totalorder %s22, 3
      %p75 = scmp.ne.s32.totalorder %s70, %s72
      %p76 = scmp.eq.s32.totalorder %s22, 0
      %p77 = por %p75, %p76
      %p78 = scmp.ne.s32.totalorder %s70, %s72
      %p79 = scmp.eq.s32.totalorder %s27, 3
      %p80 = por %p78, %p79
      %p81 = scmp.ne.s32.totalorder %s72, %s73
      %p82 = scmp.eq.s32.totalorder %s27, 0
      %p83 = por %p81, %p82
      %p84 = scmp.ne.s32.totalorder %s72, %s73
      %p85 = scmp.eq.s32.totalorder %s28, 3
      %p86 = por %p84, %p85
      %p88 = scmp.ne.s32.totalorder %s73, %s87
      %p89 = scmp.eq.s32.totalorder %s28, 0
      %p90 = por %p88, %p89
      %s92 = sadd.s32 %s91, 1
      %p95 = scmp.eq.s32.totalorder %s22, 3
      %p96 = scmp.ne.s32.totalorder %s91, %s93
      %p97 = scmp.eq.s32.totalorder %s22, 0
      %p98 = por %p96, %p97
      %p99 = scmp.ne.s32.totalorder %s91, %s93
      %p100 = scmp.eq.s32.totalorder %s27, 3
      %p101 = por %p99, %p100
      %p102 = scmp.ne.s32.totalorder %s93, %s94
      %p103 = scmp.eq.s32.totalorder %s27, 0
      %p104 = por %p102, %p103
      %p105 = scmp.ne.s32.totalorder %s93, %s94
      %p106 = scmp.eq.s32.totalorder %s28, 3
      %p107 = por %p105, %p106
      %p109 = scmp.ne.s32.totalorder %s94, %s108
      %p110 = scmp.eq.s32.totalorder %s28, 0
      %p111 = por %p109, %p110
      %s113 = sadd.s32 %s112, 1
      %p116 = scmp.eq.s32.totalorder %s22, 3
      %p117 = scmp.ne.s32.totalorder %s112, %s114
      %p118 = scmp.eq.s32.totalorder %s22, 0
      %p119 = por %p117, %p118
      %p120 = scmp.ne.s32.totalorder %s112, %s114
      %p121 = scmp.eq.s32.totalorder %s27, 3
      %p122 = por %p120, %p121
      %p123 = scmp.ne.s32.totalorder %s114, %s115
      %p124 = scmp.eq.s32.totalorder %s27, 0
      %p125 = por %p123, %p124
      %p126 = scmp.ne.s32.totalorder %s114, %s115
      %p127 = scmp.eq.s32.totalorder %s28, 3
      %p128 = por %p126, %p127
      %p130 = scmp.ne.s32.totalorder %s115, %s129
      %p131 = scmp.eq.s32.totalorder %s28, 0
      %p132 = por %p130, %p131
      %s134 = sadd.s32 %s133, 1
      %p137 = scmp.eq.s32.totalorder %s22, 3
      %p138 = scmp.ne.s32.totalorder %s133, %s135
      %p139 = scmp.eq.s32.totalorder %s22, 0
      %p140 = por %p138, %p139
      %p141 = scmp.ne.s32.totalorder %s133, %s135
      %p142 = scmp.eq.s32.totalorder %s27, 3
      %p143 = por %p141, %p142
      %p144 = scmp.ne.s32.totalorder %s135, %s136
      %p145 = scmp.eq.s32.totalorder %s27, 0
      %p146 = por %p144, %p145
      %p147 = scmp.ne.s32.totalorder %s135, %s136
      %p148 = scmp.eq.s32.totalorder %s28, 3
      %p149 = por %p147, %p148
      %p151 = scmp.ne.s32.totalorder %s136, %s150
      %p152 = scmp.eq.s32.totalorder %s28, 0
      %p153 = por %p151, %p152
      %s155 = sadd.s32 %s154, 1
      %p158 = scmp.eq.s32.totalorder %s22, 3
      %p159 = scmp.ne.s32.totalorder %s154, %s156
      %p160 = scmp.eq.s32.totalorder %s22, 0
      %p161 = por %p159, %p160
      %p162 = scmp.ne.s32.totalorder %s154, %s156
      %p163 = scmp.eq.s32.totalorder %s27, 3
      %p164 = por %p162, %p163
      %p165 = scmp.ne.s32.totalorder %s156, %s157
      %p166 = scmp.eq.s32.totalorder %s27, 0
      %p167 = por %p165, %p166
      %p168 = scmp.ne.s32.totalorder %s156, %s157
      %p169 = scmp.eq.s32.totalorder %s28, 3
      %p170 = por %p168, %p169
      %p172 = scmp.ne.s32.totalorder %s157, %s171
      %p173 = scmp.eq.s32.totalorder %s28, 0
      %p174 = por %p172, %p173
      %s176 = sadd.s32 %s175, 1
      %p179 = scmp.eq.s32.totalorder %s22, 3
      %p180 = scmp.ne.s32.totalorder %s175, %s177
      %p181 = scmp.eq.s32.totalorder %s22, 0
      %p182 = por %p180, %p181
      %p183 = scmp.ne.s32.totalorder %s175, %s177
      %p184 = scmp.eq.s32.totalorder %s27, 3
      %p185 = por %p183, %p184
      %p186 = scmp.ne.s32.totalorder %s177, %s178
      %p187 = scmp.eq.s32.totalorder %s27, 0
      %p188 = por %p186, %p187
      %p189 = scmp.ne.s32.totalorder %s177, %s178
      %p190 = scmp.eq.s32.totalorder %s28, 3
      %p191 = por %p189, %p190
      %p193 = scmp.ne.s32.totalorder %s178, %s192
      %p194 = scmp.eq.s32.totalorder %s28, 0
      %p195 = por %p193, %p194
      %s197 = sadd.s32 %s196, 1
      %p200 = scmp.eq.s32.totalorder %s22, 3
      %p201 = scmp.ne.s32.totalorder %s196, %s198
      %p202 = scmp.eq.s32.totalorder %s22, 0
      %p203 = por %p201, %p202
      %p204 = scmp.ne.s32.totalorder %s196, %s198
      %p205 = scmp.eq.s32.totalorder %s27, 3
      %p206 = por %p204, %p205
      %p207 = scmp.ne.s32.totalorder %s198, %s199
      %p208 = scmp.eq.s32.totalorder %s27, 0
      %p209 = por %p207, %p208
      %p210 = scmp.ne.s32.totalorder %s198, %s199
      %p211 = scmp.eq.s32.totalorder %s28, 3
      %p212 = por %p210, %p211
      %p214 = scmp.ne.s32.totalorder %s199, %s213
      %p215 = scmp.eq.s32.totalorder %s28, 0
      %p216 = por %p214, %p215
      %s218 = sadd.s32 %s217, 1
      %p221 = scmp.eq.s32.totalorder %s22, 3
      %p222 = scmp.ne.s32.totalorder %s217, %s219
      %p223 = scmp.eq.s32.totalorder %s22, 0
      %p224 = por %p222, %p223
      %p225 = scmp.ne.s32.totalorder %s217, %s219
      %p226 = scmp.eq.s32.totalorder %s27, 3
      %p227 = por %p225, %p226
      %p228 = scmp.ne.s32.totalorder %s219, %s220
      %p229 = scmp.eq.s32.totalorder %s27, 0
      %p230 = por %p228, %p229
      %p231 = scmp.ne.s32.totalorder %s219, %s220
      %p232 = scmp.eq.s32.totalorder %s28, 3
      %p233 = por %p231, %p232
      %p235 = scmp.ne.s32.totalorder %s220, %s234
      %p236 = scmp.eq.s32.totalorder %s28, 0
      %p237 = por %p235, %p236
      %s239 = sadd.s32 %s238, 1
      %p242 = scmp.eq.s32.totalorder %s22, 3
      %p243 = scmp.ne.s32.totalorder %s238, %s240
      %p244 = scmp.eq.s32.totalorder %s22, 0
      %p245 = por %p243, %p244
      %p246 = scmp.ne.s32.totalorder %s238, %s240
      %p247 = scmp.eq.s32.totalorder %s27, 3
      %p248 = por %p246, %p247
      %p249 = scmp.ne.s32.totalorder %s240, %s241
      %p250 = scmp.eq.s32.totalorder %s27, 0
      %p251 = por %p249, %p250
      %p252 = scmp.ne.s32.totalorder %s240, %s241
      %p253 = scmp.eq.s32.totalorder %s28, 3
      %p254 = por %p252, %p253
      %p256 = scmp.ne.s32.totalorder %s241, %s255
      %p257 = scmp.eq.s32.totalorder %s28, 0
      %p258 = por %p256, %p257
      %s260 = sadd.s32 %s259, 1
      %p263 = scmp.eq.s32.totalorder %s22, 3
      %p264 = scmp.ne.s32.totalorder %s259, %s261
      %p265 = scmp.eq.s32.totalorder %s22, 0
      %p266 = por %p264, %p265
      %p267 = scmp.ne.s32.totalorder %s259, %s261
      %p268 = scmp.eq.s32.totalorder %s27, 3
      %p269 = por %p267, %p268
      %p270 = scmp.ne.s32.totalorder %s261, %s262
      %p271 = scmp.eq.s32.totalorder %s27, 0
      %p272 = por %p270, %p271
      %p273 = scmp.ne.s32.totalorder %s261, %s262
      %p274 = scmp.eq.s32.totalorder %s28, 3
      %p275 = por %p273, %p274
      %p277 = scmp.ne.s32.totalorder %s262, %s276
      %p278 = scmp.eq.s32.totalorder %s28, 0
      %p279 = por %p277, %p278
      %s281 = sadd.s32 %s280, 1
      %p284 = scmp.eq.s32.totalorder %s22, 3
      %p285 = scmp.ne.s32.totalorder %s280, %s282
      %p286 = scmp.eq.s32.totalorder %s22, 0
      %p287 = por %p285, %p286
      %p288 = scmp.ne.s32.totalorder %s280, %s282
      %p289 = scmp.eq.s32.totalorder %s27, 3
      %p290 = por %p288, %p289
      %p291 = scmp.ne.s32.totalorder %s282, %s283
      %p292 = scmp.eq.s32.totalorder %s27, 0
      %p293 = por %p291, %p292
      %p294 = scmp.ne.s32.totalorder %s282, %s283
      %p295 = scmp.eq.s32.totalorder %s28, 3
      %p296 = por %p294, %p295
      %p298 = scmp.ne.s32.totalorder %s283, %s297
      %p299 = scmp.eq.s32.totalorder %s28, 0
      %p300 = por %p298, %p299
      %s302 = sadd.s32 %s301, 1
      %p305 = scmp.eq.s32.totalorder %s22, 3
      %p306 = scmp.ne.s32.totalorder %s301, %s303
      %p307 = scmp.eq.s32.totalorder %s22, 0
      %p308 = por %p306, %p307
      %p309 = scmp.ne.s32.totalorder %s301, %s303
      %p310 = scmp.eq.s32.totalorder %s27, 3
      %p311 = por %p309, %p310
      %p312 = scmp.ne.s32.totalorder %s303, %s304
      %p313 = scmp.eq.s32.totalorder %s27, 0
      %p314 = por %p312, %p313
      %p315 = scmp.ne.s32.totalorder %s303, %s304
      %p316 = scmp.eq.s32.totalorder %s28, 3
      %p317 = por %p315, %p316
      %p319 = scmp.ne.s32.totalorder %s304, %s318
      %p320 = scmp.eq.s32.totalorder %s28, 0
      %p321 = por %p319, %p320
      %s322 = ssub.s32 %s29, %s41
      %s323 = ssub.s32 %s30, %s37
      %s324 = sor.u32 %s322, %s323
      %p325 = scmp.eq.s32.totalorder %s324, 0
      %s327 = sadd.s32 %s326, 1
      %s328 = scalar_select %p325, %s326, %s327
      %p331 = pneg %p325
      %p332 = scmp.eq.s32.totalorder %s22, 3
      %p333 = por %p331, %p332
      %p334 = scmp.ne.s32.totalorder %s326, %s329
      %p335 = scmp.eq.s32.totalorder %s22, 0
      %p336 = por %p334, %p335
      %p337 = scmp.ne.s32.totalorder %s326, %s329
      %p338 = scmp.eq.s32.totalorder %s27, 3
      %p339 = por %p337, %p338
      %p340 = scmp.ne.s32.totalorder %s329, %s330
      %p341 = scmp.eq.s32.totalorder %s27, 0
      %p342 = por %p340, %p341
      %p343 = scmp.ne.s32.totalorder %s329, %s330
      %p344 = scmp.eq.s32.totalorder %s28, 3
      %p345 = por %p343, %p344
      %p347 = scmp.ne.s32.totalorder %s330, %s346
      %p348 = scmp.eq.s32.totalorder %s28, 0
      %p349 = por %p347, %p348
      %p350 = scmp.le.s32.totalorder 1, %s22
      %p351 = scmp.lt.s32.totalorder %s22, 5
      %p352 = pnand %p350, %p351
      %p353 = pneg %p352
      // Predicated region
      $region9: #{tpu_custom_call.1} parent=5 // pred_check
        _
      $region10: #{tpu_custom_call.1} parent=5 // pred_check_branch
        %355 = sbr.rel (%p352) target = $region12
      $region11: #{tpu_custom_call.1} parent=5 // pred_region
        %s356 = ssub.s32 %s22, 1
        // Predicated region
        $region13: #{tpu_custom_call.1} parent=11 // pred_check
          %p357 = pneg %p83
        $region14: #{tpu_custom_call.1} parent=11 // pred_check_branch
          %359 = sbr.rel (%p357) target = $region16
        $region15: #{tpu_custom_call.1} parent=11 // pred_region
          _
        $region16: #{tpu_custom_call.1} parent=11 // pred_fallthru
          _
        // Predicated region
        $region17: #{tpu_custom_call.1} parent=11 // pred_check
          %p360 = pneg %p104
        $region18: #{tpu_custom_call.1} parent=11 // pred_check_branch
          %362 = sbr.rel (%p360) target = $region20
        $region19: #{tpu_custom_call.1} parent=11 // pred_region
          _
        $region20: #{tpu_custom_call.1} parent=11 // pred_fallthru
          _
        // Predicated region
        $region21: #{tpu_custom_call.1} parent=11 // pred_check
          %p363 = pneg %p125
        $region22: #{tpu_custom_call.1} parent=11 // pred_check_branch
          %365 = sbr.rel (%p363) target = $region24
        $region23: #{tpu_custom_call.1} parent=11 // pred_region
          _
        $region24: #{tpu_custom_call.1} parent=11 // pred_fallthru
          _
        // Predicated region
        $region25: #{tpu_custom_call.1} parent=11 // pred_check
          %p366 = pneg %p146
        $region26: #{tpu_custom_call.1} parent=11 // pred_check_branch
          %368 = sbr.rel (%p366) target = $region28
        $region27: #{tpu_custom_call.1} parent=11 // pred_region
          _
        $region28: #{tpu_custom_call.1} parent=11 // pred_fallthru
          _
        // Predicated region
        $region29: #{tpu_custom_call.1} parent=11 // pred_check
          %p369 = pneg %p167
        $region30: #{tpu_custom_call.1} parent=11 // pred_check_branch
          %371 = sbr.rel (%p369) target = $region32
        $region31: #{tpu_custom_call.1} parent=11 // pred_region
          _
        $region32: #{tpu_custom_call.1} parent=11 // pred_fallthru
          _
        // Predicated region
        $region33: #{tpu_custom_call.1} parent=11 // pred_check
          %p372 = pneg %p188
        $region34: #{tpu_custom_call.1} parent=11 // pred_check_branch
          %374 = sbr.rel (%p372) target = $region36
        $region35: #{tpu_custom_call.1} parent=11 // pred_region
          _
        $region36: #{tpu_custom_call.1} parent=11 // pred_fallthru
          _
        // Predicated region
        $region37: #{tpu_custom_call.1} parent=11 // pred_check
          %p375 = pneg %p209
        $region38: #{tpu_custom_call.1} parent=11 // pred_check_branch
          %377 = sbr.rel (%p375) target = $region40
        $region39: #{tpu_custom_call.1} parent=11 // pred_region
          _
        $region40: #{tpu_custom_call.1} parent=11 // pred_fallthru
          _
        // Predicated region
        $region41: #{tpu_custom_call.1} parent=11 // pred_check
          %p378 = pneg %p230
        $region42: #{tpu_custom_call.1} parent=11 // pred_check_branch
          %380 = sbr.rel (%p378) target = $region44
        $region43: #{tpu_custom_call.1} parent=11 // pred_region
          _
        $region44: #{tpu_custom_call.1} parent=11 // pred_fallthru
          _
        // Predicated region
        $region45: #{tpu_custom_call.1} parent=11 // pred_check
          %p381 = pneg %p251
        $region46: #{tpu_custom_call.1} parent=11 // pred_check_branch
          %383 = sbr.rel (%p381) target = $region48
        $region47: #{tpu_custom_call.1} parent=11 // pred_region
          _
        $region48: #{tpu_custom_call.1} parent=11 // pred_fallthru
          _
        // Predicated region
        $region49: #{tpu_custom_call.1} parent=11 // pred_check
          %p384 = pneg %p272
        $region50: #{tpu_custom_call.1} parent=11 // pred_check_branch
          %386 = sbr.rel (%p384) target = $region52
        $region51: #{tpu_custom_call.1} parent=11 // pred_region
          _
        $region52: #{tpu_custom_call.1} parent=11 // pred_fallthru
          _
        // Predicated region
        $region53: #{tpu_custom_call.1} parent=11 // pred_check
          %p387 = pneg %p293
        $region54: #{tpu_custom_call.1} parent=11 // pred_check_branch
          %389 = sbr.rel (%p387) target = $region56
        $region55: #{tpu_custom_call.1} parent=11 // pred_region
          _
        $region56: #{tpu_custom_call.1} parent=11 // pred_fallthru
          _
        // Predicated region
        $region57: #{tpu_custom_call.1} parent=11 // pred_check
          %p390 = pneg %p314
        $region58: #{tpu_custom_call.1} parent=11 // pred_check_branch
          %392 = sbr.rel (%p390) target = $region60
        $region59: #{tpu_custom_call.1} parent=11 // pred_region
          _
        $region60: #{tpu_custom_call.1} parent=11 // pred_fallthru
          _
      $region12: #{tpu_custom_call.1} parent=5 // pred_fallthru
        _
      %p393 = scmp.lt.s32.totalorder %s22, 4
      // Predicated region
      $region61: #{tpu_custom_call.1} parent=5 // pred_check
        %p394 = pneg %p393
      $region62: #{tpu_custom_call.1} parent=5 // pred_check_branch
        %396 = sbr.rel (%p394) target = $region64
      $region63: #{tpu_custom_call.1} parent=5 // pred_region
        // Predicated region
        $region65: #{tpu_custom_call.1} parent=63 // pred_check
          %p397 = pneg %p56
        $region66: #{tpu_custom_call.1} parent=63 // pred_check_branch
          %399 = sbr.rel (%p397) target = $region68
        $region67: #{tpu_custom_call.1} parent=63 // pred_region
          %p400 = scmp.lt.s32.totalorder %s29, 1
          %s401 = scalar_select %p400, %s29, 1
          %p402 = scmp.lt.s32.totalorder %s30, 1
          %s403 = scalar_select %p402, %s30, 1
          %s404 = smul.addr %s401, 2
          %s405 = sadd.s32 %s403, %s404
          %s406 = smul.addr %s405, 8
          %s407 = scalar_lea.vmem %s0, %s406
        $region68: #{tpu_custom_call.1} parent=63 // pred_fallthru
          _
      $region64: #{tpu_custom_call.1} parent=5 // pred_fallthru
        _
      %p408 = scmp.le.s32.totalorder 1, %s22
      %p409 = scmp.lt.s32.totalorder %s22, 5
      %p410 = pnand %p408, %p409
      %p411 = pneg %p410
      // Predicated region
      $region69: #{tpu_custom_call.1} parent=5 // pred_check
        _
      $region70: #{tpu_custom_call.1} parent=5 // pred_check_branch
        %413 = sbr.rel (%p410) target = $region72
      $region71: #{tpu_custom_call.1} parent=5 // pred_region
        %s414 = ssub.s32 %s22, 1
        %p415 = scmp.lt.s32.totalorder %s31, 1
        %s416 = scalar_select %p415, %s31, 1
        %p417 = scmp.lt.s32.totalorder %s32, 1
        %s418 = scalar_select %p417, %s32, 1
        %s419 = smul.addr %s416, 2
        %s420 = sadd.s32 %s418, %s419
        %s421 = smul.addr %s420, 8
        %s422 = scalar_lea.vmem %s0, %s421
        %p423 = pneg %p62
        %p424 = pneg %p59
        %p425 = pneg %p83
        %p426 = pneg %p80
        %p427 = pneg %p104
        %p428 = pneg %p101
        %p429 = pneg %p125
        %p430 = pneg %p122
        %p431 = pneg %p146
        %p432 = pneg %p143
        %p433 = pneg %p167
        %p434 = pneg %p164
        %p435 = pneg %p188
        %p436 = pneg %p185
        %p437 = pneg %p209
        %p438 = pneg %p206
        %p439 = pneg %p230
        %p440 = pneg %p227
        %p441 = pneg %p251
        %p442 = pneg %p248
        %p443 = pneg %p272
        %p444 = pneg %p269
        %p445 = pneg %p293
        %p446 = pneg %p290
        %p447 = pneg %p314
        %p448 = pneg %p311
        %p449 = pneg %p342
        %p450 = pneg %p339
        %s451 = sand.u32 %s329, 1
        %s452 = scalar_lea.sflag [#allocation4], %s451
        %s453 = sand.u32 %s329, 1
        %s454 = smul.addr %s453, 8
        %s455 = scalar_lea.vmem [#allocation3], %s454
        %p456 = scmp.lt.s32.totalorder %s31, 1
        %s457 = scalar_select %p456, %s31, 1
        %p458 = scmp.lt.s32.totalorder %s32, 1
        %s459 = scalar_select %p458, %s32, 1
        %s460 = smul.addr %s457, 2
        %s461 = sadd.s32 %s459, %s460
        %s462 = smul.addr %s461, 8
        %s463 = scalar_lea.vmem %s0, %s462
        %v464 = vld [vmem:[%s463] sm:$0xff]
        %v465 = vld [vmem:[%s1] sm:$0x1]
        %v466 = vld [vmem:[%s2] sm:$0x1]
        %vm467 = vcmask 261120
        %v468 = vsel %vm467, %v464, 0.0
        %469 = vadd.xlane.f32.xlu0 %v468
        %v470 = vpop.xlane.xlu0 %469
        %v471 = vrcp.pop 32.0
        %v472 = vmul.f32 %v470, %v471
        %v473 = vsub.f32 %v464, %v472
        %v474 = vmul.f32 %v473, %v473
        %v475 = vsel %vm467, %v474, 0.0
        %476 = vadd.xlane.f32.xlu0 %v475
        %v477 = vpop.xlane.xlu0 %476
        %v478 = vmul.f32 %v477, %v471
        %v479 = vadd.f32 %v478, 1e-05
        %v480 = vrsqrt.pop %v479
        %v481 = vmul.f32 %v473, %v480
        %v483 = vlaneseq
        %v484 = vshrl.u32 %v483, 7
        %v485 = vsub.s32 0, %v484
        %v486 = vrot.slane %v465, %v485
        %v488 = vmul.f32 %v481, %v486
        %v490 = vlaneseq
        %v491 = vshrl.u32 %v490, 7
        %v492 = vsub.s32 0, %v491
        %v493 = vrot.slane %v466, %v492
        %v495 = vadd.f32 %v488, %v493
        %v496 = vmax.f32 %v495, 0.0
        %v497 = vld [vmem:[%s3] sm:$0xff]
        %v498 = vld [vmem:[%s3 + $0x8] sm:$0xff]
        %v499 = vld [vmem:[%s3 + $0x10] sm:$0xff]
        %v500 = vld [vmem:[%s3 + $0x18] sm:$0xff]
        %v501 = vld [vmem:[%s4] sm:$0x1]
        %v503 = vlaneseq
        %v504 = vshrl.u32 %v503, 7
        %v505 = vsub.s32 0, %v504
        %v506 = vrot.slane %v501, %v505
        %v509 = vsel %vm467, %v496, 0
        %511 = vmatprep.subr.mxu0 0.0
        %512 = vmatpush1.msra.mxu0 %v497
        %513 = vmatprep.subr.mxu0 0.0
        %514 = vmatpush1.msra.mxu0 %v498
        %515 = vmatprep.subr.mxu0 0.0
        %516 = vmatpush1.msra.mxu0 %v499
        %517 = vmatprep.subr.mxu0 0.0
        %518 = vmatpush1.msra.mxu0 %v500
        %519 = vmatprep.subr.mxu0 0.0
        %520 = vmatpush1.msra.mxu0 0.0
        %521 = vmatprep.subr.mxu0 0.0
        %522 = vmatpush1.msra.mxu0 0.0
        %523 = vmatprep.subr.mxu0 0.0
        %524 = vmatpush1.msra.mxu0 0.0
        %525 = vmatprep.subr.mxu0 0.0
        %526 = vmatpush1.msra.mxu0 0.0
        %527 = vmatprep.subr.mxu0 0.0
        %528 = vmatpush1.msra.mxu0 0.0
        %529 = vmatprep.subr.mxu0 0.0
        %530 = vmatpush1.msra.mxu0 0.0
        %531 = vmatprep.subr.mxu0 0.0
        %532 = vmatpush1.msra.mxu0 0.0
        %533 = vmatprep.subr.mxu0 0.0
        %534 = vmatpush1.msra.mxu0 0.0
        %535 = vmatprep.subr.mxu0 0.0
        %536 = vmatpush1.msra.mxu0 0.0
        %537 = vmatprep.subr.mxu0 0.0
        %538 = vmatpush1.msra.mxu0 0.0
        %539 = vmatprep.subr.mxu0 0.0
        %540 = vmatpush1.msra.mxu0 0.0
        %541 = vmatprep.subr.mxu0 0.0
        %542 = vmatpush1.msra.mxu0 0.0
        %543 = vmatprep.subr.mxu0 0.0
        %544 = vmatpush1.msra.mxu0 0.0
        %545 = vmatprep.subr.mxu0 0.0
        %546 = vmatpush1.msra.mxu0 0.0
        %547 = vmatprep.subr.mxu0 0.0
        %548 = vmatpush1.msra.mxu0 0.0
        %549 = vmatprep.subr.mxu0 0.0
        %550 = vmatpush1.msra.mxu0 0.0
        %551 = vmatprep.subr.mxu0 0.0
        %552 = vmatpush1.msra.mxu0 0.0
        %553 = vmatprep.subr.mxu0 0.0
        %554 = vmatpush1.msra.mxu0 0.0
        %555 = vmatprep.subr.mxu0 0.0
        %556 = vmatpush1.msra.mxu0 0.0
        %557 = vmatprep.subr.mxu0 0.0
        %558 = vmatpush1.msra.mxu0 0.0
        %559 = vmatprep.subr.mxu0 0.0
        %560 = vmatpush1.msra.mxu0 0.0
        %561 = vmatprep.subr.mxu0 0.0
        %562 = vmatpush1.msra.mxu0 0.0
        %563 = vmatprep.subr.mxu0 0.0
        %564 = vmatpush1.msra.mxu0 0.0
        %565 = vmatprep.subr.mxu0 0.0
        %566 = vmatpush1.msra.mxu0 0.0
        %567 = vmatprep.subr.mxu0 0.0
        %568 = vmatpush1.msra.mxu0 0.0
        %569 = vmatprep.subr.mxu0 0.0
        %570 = vmatpush1.msra.mxu0 0.0
        %571 = vmatprep.subr.mxu0 0.0
        %572 = vmatpush1.msra.mxu0 0.0
        %573 = vmatprep.subr.mxu0 0.0
        %574 = vmatpush1.msra.mxu0 0.0
        %575 = vmatprep.mubr.f32.mxu0 0.0
        %576 = vmatmul.mubr.f32.gmra.mrb[0].mxu0 %v509
        %v577 = vpop.f32.mrb[0].mxu0
        %v578 = vadd.f32 %v506, %v577
        %v579 = vpop.f32.mrb[0].mxu0
        %580 = vdwg.mxu0
        %v581 = vld [vmem:[%s5] sm:$0x1]
        %v582 = vld [vmem:[%s6] sm:$0x1]
        %vm583 = vcmask 130048
        %v584 = vsel %vm583, %v578, 0.0
        %585 = vadd.xlane.f32.xlu0 %v584
        %v586 = vpop.xlane.xlu0 %585
        %v587 = vrcp.pop 16.0
        %v588 = vmul.f32 %v586, %v587
        %v589 = vsub.f32 %v578, %v588
        %v590 = vmul.f32 %v589, %v589
        %v591 = vsel %vm583, %v590, 0.0
        %592 = vadd.xlane.f32.xlu0 %v591
        %v593 = vpop.xlane.xlu0 %592
        %v594 = vmul.f32 %v593, %v587
        %v595 = vadd.f32 %v594, 1e-05
        %v596 = vrsqrt.pop %v595
        %v597 = vmul.f32 %v589, %v596
        %v599 = vlaneseq
        %v600 = vshrl.u32 %v599, 7
        %v601 = vsub.s32 0, %v600
        %v602 = vrot.slane %v581, %v601
        %v604 = vmul.f32 %v597, %v602
        %v606 = vlaneseq
        %v607 = vshrl.u32 %v606, 7
        %v608 = vsub.s32 0, %v607
        %v609 = vrot.slane %v582, %v608
        %v611 = vadd.f32 %v604, %v609
        %v612 = vmax.f32 %v611, 0.0
        %p613 = scmp.eq.s32.totalorder %s32, 0
        // Predicated region
        $region73: #{tpu_custom_call.1} parent=71 // pred_check
          %p614 = pneg %p613
        $region74: #{tpu_custom_call.1} parent=71 // pred_check_branch
          %616 = sbr.rel (%p614) target = $region76
        $region75: #{tpu_custom_call.1} parent=71 // pred_region
          %617 = vst.msk [vmem:[#allocation2] sm:$0xff] %vm583, 0.0
        $region76: #{tpu_custom_call.1} parent=71 // pred_fallthru
          _
        %618 = vst.msk [vmem:[#allocation2 + $0x8] sm:$0xff] %vm583, %v612
        %v619 = vld [vmem:[%s8] sm:$0x1]
        %v621 = vlaneseq
        %v622 = vshrl.u32 %v621, 7
        %v623 = vsub.s32 0, %v622
        %v624 = vrot.slane %v619, %v623
        %v626 = vld [vmem:[#allocation2 + $0x4] sm:$0xff]
        %v627 = vld [vmem:[%s7] sm:$0xff]
        %v628 = vld [vmem:[%s7 + $0x8] sm:$0xff]
        %v630 = vsel %vm583, %v626, 0
        %632 = vmatprep.subr.mxu0 0.0
        %633 = vmatpush1.msra.mxu0 %v627
        %634 = vmatprep.subr.mxu0 0.0
        %635 = vmatpush1.msra.mxu0 %v628
        %636 = vmatprep.subr.mxu0 0.0
        %637 = vmatpush1.msra.mxu0 0.0
        %638 = vmatprep.subr.mxu0 0.0
        %639 = vmatpush1.msra.mxu0 0.0
        %640 = vmatprep.subr.mxu0 0.0
        %641 = vmatpush1.msra.mxu0 0.0
        %642 = vmatprep.subr.mxu0 0.0
        %643 = vmatpush1.msra.mxu0 0.0
        %644 = vmatprep.subr.mxu0 0.0
        %645 = vmatpush1.msra.mxu0 0.0
        %646 = vmatprep.subr.mxu0 0.0
        %647 = vmatpush1.msra.mxu0 0.0
        %648 = vmatprep.subr.mxu0 0.0
        %649 = vmatpush1.msra.mxu0 0.0
        %650 = vmatprep.subr.mxu0 0.0
        %651 = vmatpush1.msra.mxu0 0.0
        %652 = vmatprep.subr.mxu0 0.0
        %653 = vmatpush1.msra.mxu0 0.0
        %654 = vmatprep.subr.mxu0 0.0
        %655 = vmatpush1.msra.mxu0 0.0
        %656 = vmatprep.subr.mxu0 0.0
        %657 = vmatpush1.msra.mxu0 0.0
        %658 = vmatprep.subr.mxu0 0.0
        %659 = vmatpush1.msra.mxu0 0.0
        %660 = vmatprep.subr.mxu0 0.0
        %661 = vmatpush1.msra.mxu0 0.0
        %662 = vmatprep.subr.mxu0 0.0
        %663 = vmatpush1.msra.mxu0 0.0
        %664 = vmatprep.subr.mxu0 0.0
        %665 = vmatpush1.msra.mxu0 0.0
        %666 = vmatprep.subr.mxu0 0.0
        %667 = vmatpush1.msra.mxu0 0.0
        %668 = vmatprep.subr.mxu0 0.0
        %669 = vmatpush1.msra.mxu0 0.0
        %670 = vmatprep.subr.mxu0 0.0
        %671 = vmatpush1.msra.mxu0 0.0
        %672 = vmatprep.subr.mxu0 0.0
        %673 = vmatpush1.msra.mxu0 0.0
        %674 = vmatprep.subr.mxu0 0.0
        %675 = vmatpush1.msra.mxu0 0.0
        %676 = vmatprep.subr.mxu0 0.0
        %677 = vmatpush1.msra.mxu0 0.0
        %678 = vmatprep.subr.mxu0 0.0
        %679 = vmatpush1.msra.mxu0 0.0
        %680 = vmatprep.subr.mxu0 0.0
        %681 = vmatpush1.msra.mxu0 0.0
        %682 = vmatprep.subr.mxu0 0.0
        %683 = vmatpush1.msra.mxu0 0.0
        %684 = vmatprep.subr.mxu0 0.0
        %685 = vmatpush1.msra.mxu0 0.0
        %686 = vmatprep.subr.mxu0 0.0
        %687 = vmatpush1.msra.mxu0 0.0
        %688 = vmatprep.subr.mxu0 0.0
        %689 = vmatpush1.msra.mxu0 0.0
        %690 = vmatprep.subr.mxu0 0.0
        %691 = vmatpush1.msra.mxu0 0.0
        %692 = vmatprep.subr.mxu0 0.0
        %693 = vmatpush1.msra.mxu0 0.0
        %694 = vmatprep.subr.mxu0 0.0
        %695 = vmatpush1.msra.mxu0 0.0
        %696 = vmatprep.mubr.f32.mxu0 0.0
        %697 = vmatmul.mubr.f32.gmra.mrb[0].mxu0 %v630
        %v698 = vpop.f32.mrb[0].mxu0
        %v699 = vadd.f32 0.0, %v698
        %v700 = vpop.f32.mrb[0].mxu0
        %701 = vdwg.mxu0
        %v702 = vadd.f32 %v624, %v699
        %v703 = vld [vmem:[#allocation2 + $0x6] sm:$0xff]
        %v704 = vld [vmem:[%s7 + $0x10] sm:$0xff]
        %v705 = vld [vmem:[%s7 + $0x18] sm:$0xff]
        %v707 = vsel %vm583, %v703, 0
        %709 = vmatprep.subr.mxu0 0.0
        %710 = vmatpush1.msra.mxu0 %v704
        %711 = vmatprep.subr.mxu0 0.0
        %712 = vmatpush1.msra.mxu0 %v705
        %713 = vmatprep.subr.mxu0 0.0
        %714 = vmatpush1.msra.mxu0 0.0
        %715 = vmatprep.subr.mxu0 0.0
        %716 = vmatpush1.msra.mxu0 0.0
        %717 = vmatprep.subr.mxu0 0.0
        %718 = vmatpush1.msra.mxu0 0.0
        %719 = vmatprep.subr.mxu0 0.0
        %720 = vmatpush1.msra.mxu0 0.0
        %721 = vmatprep.subr.mxu0 0.0
        %722 = vmatpush1.msra.mxu0 0.0
        %723 = vmatprep.subr.mxu0 0.0
        %724 = vmatpush1.msra.mxu0 0.0
        %725 = vmatprep.subr.mxu0 0.0
        %726 = vmatpush1.msra.mxu0 0.0
        %727 = vmatprep.subr.mxu0 0.0
        %728 = vmatpush1.msra.mxu0 0.0
        %729 = vmatprep.subr.mxu0 0.0
        %730 = vmatpush1.msra.mxu0 0.0
        %731 = vmatprep.subr.mxu0 0.0
        %732 = vmatpush1.msra.mxu0 0.0
        %733 = vmatprep.subr.mxu0 0.0
        %734 = vmatpush1.msra.mxu0 0.0
        %735 = vmatprep.subr.mxu0 0.0
        %736 = vmatpush1.msra.mxu0 0.0
        %737 = vmatprep.subr.mxu0 0.0
        %738 = vmatpush1.msra.mxu0 0.0
        %739 = vmatprep.subr.mxu0 0.0
        %740 = vmatpush1.msra.mxu0 0.0
        %741 = vmatprep.subr.mxu0 0.0
        %742 = vmatpush1.msra.mxu0 0.0
        %743 = vmatprep.subr.mxu0 0.0
        %744 = vmatpush1.msra.mxu0 0.0
        %745 = vmatprep.subr.mxu0 0.0
        %746 = vmatpush1.msra.mxu0 0.0
        %747 = vmatprep.subr.mxu0 0.0
        %748 = vmatpush1.msra.mxu0 0.0
        %749 = vmatprep.subr.mxu0 0.0
        %750 = vmatpush1.msra.mxu0 0.0
        %751 = vmatprep.subr.mxu0 0.0
        %752 = vmatpush1.msra.mxu0 0.0
        %753 = vmatprep.subr.mxu0 0.0
        %754 = vmatpush1.msra.mxu0 0.0
        %755 = vmatprep.subr.mxu0 0.0
        %756 = vmatpush1.msra.mxu0 0.0
        %757 = vmatprep.subr.mxu0 0.0
        %758 = vmatpush1.msra.mxu0 0.0
        %759 = vmatprep.subr.mxu0 0.0
        %760 = vmatpush1.msra.mxu0 0.0
        %761 = vmatprep.subr.mxu0 0.0
        %762 = vmatpush1.msra.mxu0 0.0
        %763 = vmatprep.subr.mxu0 0.0
        %764 = vmatpush1.msra.mxu0 0.0
        %765 = vmatprep.subr.mxu0 0.0
        %766 = vmatpush1.msra.mxu0 0.0
        %767 = vmatprep.subr.mxu0 0.0
        %768 = vmatpush1.msra.mxu0 0.0
        %769 = vmatprep.subr.mxu0 0.0
        %770 = vmatpush1.msra.mxu0 0.0
        %771 = vmatprep.subr.mxu0 0.0
        %772 = vmatpush1.msra.mxu0 0.0
        %773 = vmatprep.mubr.f32.mxu0 0.0
        %774 = vmatmul.mubr.f32.gmra.mrb[0].mxu0 %v707
        %v775 = vpop.f32.mrb[0].mxu0
        %v776 = vadd.f32 0.0, %v775
        %v777 = vpop.f32.mrb[0].mxu0
        %778 = vdwg.mxu0
        %v779 = vadd.f32 %v702, %v776
        %v780 = vld [vmem:[#allocation2 + $0x8] sm:$0xff]
        %v781 = vld [vmem:[%s7 + $0x20] sm:$0xff]
        %v782 = vld [vmem:[%s7 + $0x28] sm:$0xff]
        %v784 = vsel %vm583, %v780, 0
        %786 = vmatprep.subr.mxu0 0.0
        %787 = vmatpush1.msra.mxu0 %v781
        %788 = vmatprep.subr.mxu0 0.0
        %789 = vmatpush1.msra.mxu0 %v782
        %790 = vmatprep.subr.mxu0 0.0
        %791 = vmatpush1.msra.mxu0 0.0
        %792 = vmatprep.subr.mxu0 0.0
        %793 = vmatpush1.msra.mxu0 0.0
        %794 = vmatprep.subr.mxu0 0.0
        %795 = vmatpush1.msra.mxu0 0.0
        %796 = vmatprep.subr.mxu0 0.0
        %797 = vmatpush1.msra.mxu0 0.0
        %798 = vmatprep.subr.mxu0 0.0
        %799 = vmatpush1.msra.mxu0 0.0
        %800 = vmatprep.subr.mxu0 0.0
        %801 = vmatpush1.msra.mxu0 0.0
        %802 = vmatprep.subr.mxu0 0.0
        %803 = vmatpush1.msra.mxu0 0.0
        %804 = vmatprep.subr.mxu0 0.0
        %805 = vmatpush1.msra.mxu0 0.0
        %806 = vmatprep.subr.mxu0 0.0
        %807 = vmatpush1.msra.mxu0 0.0
        %808 = vmatprep.subr.mxu0 0.0
        %809 = vmatpush1.msra.mxu0 0.0
        %810 = vmatprep.subr.mxu0 0.0
        %811 = vmatpush1.msra.mxu0 0.0
        %812 = vmatprep.subr.mxu0 0.0
        %813 = vmatpush1.msra.mxu0 0.0
        %814 = vmatprep.subr.mxu0 0.0
        %815 = vmatpush1.msra.mxu0 0.0
        %816 = vmatprep.subr.mxu0 0.0
        %817 = vmatpush1.msra.mxu0 0.0
        %818 = vmatprep.subr.mxu0 0.0
        %819 = vmatpush1.msra.mxu0 0.0
        %820 = vmatprep.subr.mxu0 0.0
        %821 = vmatpush1.msra.mxu0 0.0
        %822 = vmatprep.subr.mxu0 0.0
        %823 = vmatpush1.msra.mxu0 0.0
        %824 = vmatprep.subr.mxu0 0.0
        %825 = vmatpush1.msra.mxu0 0.0
        %826 = vmatprep.subr.mxu0 0.0
        %827 = vmatpush1.msra.mxu0 0.0
        %828 = vmatprep.subr.mxu0 0.0
        %829 = vmatpush1.msra.mxu0 0.0
        %830 = vmatprep.subr.mxu0 0.0
        %831 = vmatpush1.msra.mxu0 0.0
        %832 = vmatprep.subr.mxu0 0.0
        %833 = vmatpush1.msra.mxu0 0.0
        %834 = vmatprep.subr.mxu0 0.0
        %835 = vmatpush1.msra.mxu0 0.0
        %836 = vmatprep.subr.mxu0 0.0
        %837 = vmatpush1.msra.mxu0 0.0
        %838 = vmatprep.subr.mxu0 0.0
        %839 = vmatpush1.msra.mxu0 0.0
        %840 = vmatprep.subr.mxu0 0.0
        %841 = vmatpush1.msra.mxu0 0.0
        %842 = vmatprep.subr.mxu0 0.0
        %843 = vmatpush1.msra.mxu0 0.0
        %844 = vmatprep.subr.mxu0 0.0
        %845 = vmatpush1.msra.mxu0 0.0
        %846 = vmatprep.subr.mxu0 0.0
        %847 = vmatpush1.msra.mxu0 0.0
        %848 = vmatprep.subr.mxu0 0.0
        %849 = vmatpush1.msra.mxu0 0.0
        %850 = vmatprep.mubr.f32.mxu0 0.0
        %851 = vmatmul.mubr.f32.gmra.mrb[0].mxu0 %v784
        %v852 = vpop.f32.mrb[0].mxu0
        %v853 = vadd.f32 0.0, %v852
        %v854 = vpop.f32.mrb[0].mxu0
        %855 = vdwg.mxu0
        %v856 = vadd.f32 %v779, %v853
        %v857 = vld [vmem:[#allocation2 + $0xc] sm:$0xf]
        %vm858 = vcmask 125952
        %859 = vst.msk [vmem:[#allocation2 + $0x4] sm:$0xf] %vm858, %v857
        %v860 = vld [vmem:[%s9] sm:$0x1]
        %v861 = vld [vmem:[%s10] sm:$0x1]
        %v862 = vsel %vm583, %v856, 0.0
        %863 = vadd.xlane.f32.xlu0 %v862
        %v864 = vpop.xlane.xlu0 %863
        %v865 = vmul.f32 %v864, %v587
        %v866 = vsub.f32 %v856, %v865
        %v867 = vmul.f32 %v866, %v866
        %v868 = vsel %vm583, %v867, 0.0
        %869 = vadd.xlane.f32.xlu0 %v868
        %v870 = vpop.xlane.xlu0 %869
        %v871 = vmul.f32 %v870, %v587
        %v872 = vadd.f32 %v871, 1e-05
        %v873 = vrsqrt.pop %v872
        %v874 = vmul.f32 %v866, %v873
        %v876 = vlaneseq
        %v877 = vshrl.u32 %v876, 7
        %v878 = vsub.s32 0, %v877
        %v879 = vrot.slane %v860, %v878
        %v881 = vmul.f32 %v874, %v879
        %v883 = vlaneseq
        %v884 = vshrl.u32 %v883, 7
        %v885 = vsub.s32 0, %v884
        %v886 = vrot.slane %v861, %v885
        %v888 = vadd.f32 %v881, %v886
        %v889 = vmax.f32 %v888, 0.0
        %v890 = vld [vmem:[%s11] sm:$0xff]
        %v891 = vld [vmem:[%s11 + $0x8] sm:$0xff]
        %v892 = vld [vmem:[%s12] sm:$0x1]
        %v894 = vlaneseq
        %v895 = vshrl.u32 %v894, 7
        %v896 = vsub.s32 0, %v895
        %v897 = vrot.slane %v892, %v896
        %v900 = vsel %vm583, %v889, 0
        %902 = vmatprep.subr.mxu0 0.0
        %903 = vmatpush1.msra.mxu0 %v890
        %904 = vmatprep.subr.mxu0 0.0
        %905 = vmatpush1.msra.mxu0 %v891
        %906 = vmatprep.subr.mxu0 0.0
        %907 = vmatpush1.msra.mxu0 0.0
        %908 = vmatprep.subr.mxu0 0.0
        %909 = vmatpush1.msra.mxu0 0.0
        %910 = vmatprep.subr.mxu0 0.0
        %911 = vmatpush1.msra.mxu0 0.0
        %912 = vmatprep.subr.mxu0 0.0
        %913 = vmatpush1.msra.mxu0 0.0
        %914 = vmatprep.subr.mxu0 0.0
        %915 = vmatpush1.msra.mxu0 0.0
        %916 = vmatprep.subr.mxu0 0.0
        %917 = vmatpush1.msra.mxu0 0.0
        %918 = vmatprep.subr.mxu0 0.0
        %919 = vmatpush1.msra.mxu0 0.0
        %920 = vmatprep.subr.mxu0 0.0
        %921 = vmatpush1.msra.mxu0 0.0
        %922 = vmatprep.subr.mxu0 0.0
        %923 = vmatpush1.msra.mxu0 0.0
        %924 = vmatprep.subr.mxu0 0.0
        %925 = vmatpush1.msra.mxu0 0.0
        %926 = vmatprep.subr.mxu0 0.0
        %927 = vmatpush1.msra.mxu0 0.0
        %928 = vmatprep.subr.mxu0 0.0
        %929 = vmatpush1.msra.mxu0 0.0
        %930 = vmatprep.subr.mxu0 0.0
        %931 = vmatpush1.msra.mxu0 0.0
        %932 = vmatprep.subr.mxu0 0.0
        %933 = vmatpush1.msra.mxu0 0.0
        %934 = vmatprep.subr.mxu0 0.0
        %935 = vmatpush1.msra.mxu0 0.0
        %936 = vmatprep.subr.mxu0 0.0
        %937 = vmatpush1.msra.mxu0 0.0
        %938 = vmatprep.subr.mxu0 0.0
        %939 = vmatpush1.msra.mxu0 0.0
        %940 = vmatprep.subr.mxu0 0.0
        %941 = vmatpush1.msra.mxu0 0.0
        %942 = vmatprep.subr.mxu0 0.0
        %943 = vmatpush1.msra.mxu0 0.0
        %944 = vmatprep.subr.mxu0 0.0
        %945 = vmatpush1.msra.mxu0 0.0
        %946 = vmatprep.subr.mxu0 0.0
        %947 = vmatpush1.msra.mxu0 0.0
        %948 = vmatprep.subr.mxu0 0.0
        %949 = vmatpush1.msra.mxu0 0.0
        %950 = vmatprep.subr.mxu0 0.0
        %951 = vmatpush1.msra.mxu0 0.0
        %952 = vmatprep.subr.mxu0 0.0
        %953 = vmatpush1.msra.mxu0 0.0
        %954 = vmatprep.subr.mxu0 0.0
        %955 = vmatpush1.msra.mxu0 0.0
        %956 = vmatprep.subr.mxu0 0.0
        %957 = vmatpush1.msra.mxu0 0.0
        %958 = vmatprep.subr.mxu0 0.0
        %959 = vmatpush1.msra.mxu0 0.0
        %960 = vmatprep.subr.mxu0 0.0
        %961 = vmatpush1.msra.mxu0 0.0
        %962 = vmatprep.subr.mxu0 0.0
        %963 = vmatpush1.msra.mxu0 0.0
        %964 = vmatprep.subr.mxu0 0.0
        %965 = vmatpush1.msra.mxu0 0.0
        %966 = vmatprep.mubr.f32.mxu0 0.0
        %967 = vmatmul.mubr.f32.gmra.mrb[0].mxu0 %v900
        %v968 = vpop.f32.mrb[0].mxu0
        %v969 = vadd.f32 %v897, %v968
        %v970 = vpop.f32.mrb[0].mxu0
        %971 = vdwg.mxu0
        %v972 = vadd.f32 %v969, %v464
        %973 = vst.msk [vmem:[%s455] sm:$0xff] %vm467, %v972
        %s974 = sand.u32 %s329, 1
        %s975 = scalar_lea.sflag [#allocation4], %s974
        %s976 = sand.u32 %s329, 1
        %s977 = smul.addr %s976, 8
        %s978 = scalar_lea.vmem [#allocation3], %s977
        // Predicated region
        $region77: #{tpu_custom_call.1} parent=71 // pred_check
          %p979 = pneg %p339
        $region78: #{tpu_custom_call.1} parent=71 // pred_check_branch
          %981 = sbr.rel (%p979) target = $region80
        $region79: #{tpu_custom_call.1} parent=71 // pred_region
          %s983 = ssub.s32 128, 128
          %984 = vsyncadd %s975, %s983
          %s985 = smul.addr %s31, 2
          %s986 = sadd.s32 %s32, %s985
          %s987 = smul.addr %s986, 128
          %s988 = scalar_lea.hbm %s13, %s987
          %s990 = sshll.u32 %s978, 4
          %s991 = int_to_ptr.vmem [resolvable:$true] %s990
          %993 = dma.vmem_to_hbm [thread:$0]  %s991, 128, %s988, %s975
        $region80: #{tpu_custom_call.1} parent=71 // pred_fallthru
          _
      $region72: #{tpu_custom_call.1} parent=5 // pred_fallthru
        _
      %p994 = scmp.le.s32.totalorder 2, %s22
      // Predicated region
      $region81: #{tpu_custom_call.1} parent=5 // pred_check
        %p995 = pneg %p994
      $region82: #{tpu_custom_call.1} parent=5 // pred_check_branch
        %997 = sbr.rel (%p995) target = $region84
      $region83: #{tpu_custom_call.1} parent=5 // pred_region
        %s998 = ssub.s32 %s22, 2
        // Predicated region
        $region85: #{tpu_custom_call.1} parent=83 // pred_check
          %p999 = pneg %p345
        $region86: #{tpu_custom_call.1} parent=83 // pred_check_branch
          %1001 = sbr.rel (%p999) target = $region88
        $region87: #{tpu_custom_call.1} parent=83 // pred_region
          %s1002 = sand.u32 %s330, 1
          %s1003 = scalar_lea.sflag [#allocation4], %s1002
          %s1004 = sand.u32 %s330, 1
          %s1005 = smul.addr %s1004, 8
          %s1006 = scalar_lea.vmem [#allocation3], %s1005
          %1007 = dma.done %s1003, 128
        $region88: #{tpu_custom_call.1} parent=83 // pred_fallthru
          _
      $region84: #{tpu_custom_call.1} parent=5 // pred_fallthru
        _
    $region6: #{tpu_custom_call.1} parent=1 // loop_footer
      %s26 = sadd.s32 1, %s22
    $region7: #{tpu_custom_call.1} parent=1 // loop_footer_branch
      %21 = sbr.rel target = $region3
    $region8: #{tpu_custom_call.1} parent=1 // loop_exit
      _
    %1008 = vsyncpa [#allocation4], 1
    %s1009 = scalar_lea.sflag [#allocation4], 1
    %1010 = vsyncpa %s1009, 1

</llo_original>
